<compile_context>
chip_gen: v7x
topology: tpu7x:2x2x1
jax: 0.10.0
libtpu: 0.0.40
codegen_flags: <defaults>
</compile_context>

<pallas_src>
import functools

import jax
import jax.numpy as jnp
from jax.experimental import pallas as pl
from jax.experimental.pallas import tpu as pltpu

EPS = 1e-5
LANE = 128
MAX_ROWS = 8192           # tile-row cap (review items 6/7)


# ----------------------------------------------------------------------------
# Shared in-kernel conv tile: one 9*Cin-deep MXU contraction per tile.
# ----------------------------------------------------------------------------
def _conv_tile(x_ref, w_ref):
    """x_ref: (th+2, W+2, Cin) bf16 halo tile; w_ref: (9*Cin, Coutp) bf16.
    Returns (th*W, Coutp) f32 conv rows.  Reshapes stay tile-aligned when
    W % 8 == 0 (bf16: W % 16 == 0)."""
    thp2, wp2, cin = x_ref.shape
    th, w = thp2 - 2, wp2 - 2
    x = x_ref[...]
    cols = [x[kh:kh + th, kw:kw + w, :] for kh in range(3) for kw in range(3)]
    lhs = jnp.concatenate(cols, axis=-1).reshape(th * w, 9 * cin)
    return jnp.dot(lhs, w_ref[...], preferred_element_type=jnp.float32)


# ----------------------------------------------------------------------------
# Pass 1: per-tile BN partial statistics (sum, sum-of-squares) only.
# ----------------------------------------------------------------------------
def _stats_kernel(x_ref, w_ref, st_ref):
    acc = _conv_tile(x_ref, w_ref)                         # (rows, Coutp) f32
    st_ref[0:1, :] = jnp.sum(acc, axis=0, keepdims=True)   # tile sum
    st_ref[1:2, :] = jnp.sum(acc * acc, axis=0, keepdims=True)  # tile sumsq


# ----------------------------------------------------------------------------
# Pass 2: conv recompute + folded BN (scale/shift) + ReLU (+ fused MaxPool2d(2))
# ----------------------------------------------------------------------------
def _conv_bn_relu_kernel(x_ref, w_ref, scale_ref, shift_ref, o_ref):
    th, w, coutp = o_ref.shape
    acc = _conv_tile(x_ref, w_ref)
    z = jnp.maximum(acc * scale_ref[...] + shift_ref[...], 0.0)
    o_ref[...] = z.reshape(th, w, coutp)


def _conv_bn_relu_pool_kernel(x_ref, w_ref, scale_ref, shift_ref, o_ref, z_ref):
    th, w, coutp = z_ref.shape
    tho, wo = th // 2, w // 2
    acc = _conv_tile(x_ref, w_ref)
    z_ref[...] = jnp.maximum(acc * scale_ref[...] + shift_ref[...],
                             0.0).reshape(th, w, coutp)

    def corner(dh, dw):
        # stride-2 reads of the VMEM scratch select one corner of each 2x2 window
        return z_ref[pl.ds(dh, tho, 2), pl.ds(dw, wo, 2), :]

    o_ref[...] = jnp.maximum(jnp.maximum(corner(0, 0), corner(0, 1)),
                             jnp.maximum(corner(1, 0), corner(1, 1)))


# ----------------------------------------------------------------------------
# Generation-aware VMEM budget and tile-height selection.
# ----------------------------------------------------------------------------
def _vmem_limit_bytes():
    try:
        info = pltpu.get_tpu_info()
        cap = int(getattr(info, "vmem_capacity_bytes", 64 * 1024 * 1024))
    except Exception:  # pragma: no cover - fallback when query unavailable
        cap = 64 * 1024 * 1024        # assume the tightest (v7x: 64 MiB / TC)
    return min(int(cap * 0.70), 100 * 1024 * 1024)


def _tile_bytes(th, W, Cin, Coutp, pool):
    """Rough per-grid-step VMEM estimate: double-buffered blocks + temporaries."""
    rows = th * W
    inp = 2 * (th + 2) * (W + 2) * Cin * 2            # bf16 halo block x2
    wgt = 2 * 9 * Cin * Coutp * 2                     # bf16 weight x2
    out_rows = rows // 4 if pool else rows
    out = 2 * out_rows * Coutp * 4                    # f32 output block x2
    scratch = rows * Coutp * 4 if pool else 0         # pool scratch tile
    temps = 3 * rows * Coutp * 4 + 2 * rows * 9 * Cin * 2   # acc/z/lhs slack
    return inp + wgt + out + scratch + temps


def _pick_tile_h(H, W, Cin, Coutp, pool, budget, want_split):
    divs = [d for d in range(1, H + 1)
            if H % d == 0 and (not pool or d % 2 == 0)]
    fits = [d for d in divs
            if d * W <= MAX_ROWS and _tile_bytes(d, W, Cin, Coutp, pool) <= budget]
    if not fits:
        return min(divs)              # degenerate but correct fallback
    if want_split:                    # keep n_h >= 2 so dual-TC (v7x) is used
        split = [d for d in fits if d <= H // 2]
        if split:
            return max(split)
    return max(fits)


# ----------------------------------------------------------------------------
# Wrapper
# ----------------------------------------------------------------------------
@functools.partial(jax.jit, static_argnames=("pool",))
def conv_bn(x_nchw, weight, bias, gamma, beta, *, pool=False):
    """Forward pass of ConvBn (kernel 3x3, stride 1, padding 1, training BN)."""
    del bias  # exactly cancelled by training-mode BN mean subtraction
    N, Cin, H, W = x_nchw.shape
    Cout = weight.shape[0]
    assert weight.shape[1:] == (Cin, 3, 3)
    if pool:
        assert H % 2 == 0 and W % 2 == 0, "MaxPool2d(2) expects even H, W"

    Coutp = ((Cout + LANE - 1) // LANE) * LANE
    vmem_limit = _vmem_limit_bytes()
    th = _pick_tile_h(H, W, Cin, Coutp, pool,
                      budget=int(vmem_limit * 0.8), want_split=(N == 1))
    n_h = H // th
    rows = th * W

    # ---- glue: NHWC, zero pad, single overlapping halo-window gather --------
    x = jnp.transpose(x_nchw, (0, 2, 3, 1)).astype(jnp.bfloat16)      # NHWC
    xp = jnp.pad(x, ((0, 0), (1, 1), (1, 1), (0, 0)))                 # (N,H+2,W+2,Cin)
    row_idx = jnp.arange(n_h)[:, None] * th + jnp.arange(th + 2)[None, :]
    xt = xp[:, row_idx]                                               # (N,n_h,th+2,W+2,Cin)

    # weight (Cout,Cin,3,3) -> (9*Cin, Coutp) bf16, [kh,kw,cin] contraction order
    wt = jnp.transpose(weight, (2, 3, 1, 0)).astype(jnp.bfloat16)
    wt = wt.reshape(9 * Cin, Cout)
    wt = jnp.pad(wt, ((0, 0), (0, Coutp - Cout)))

    cparams = pltpu.CompilerParams(
        dimension_semantics=("parallel", "parallel"),
        vmem_limit_bytes=int(vmem_limit))

    xt_spec = pl.BlockSpec((None, None, th + 2, W + 2, Cin),
                           lambda n, t: (n, t, 0, 0, 0))
    w_spec = pl.BlockSpec((9 * Cin, Coutp), lambda n, t: (0, 0))
    chan_spec = pl.BlockSpec((1, Coutp), lambda n, t: (0, 0))

    # ---- pass 1: per-tile BN partial stats ----------------------------------
    stats = pl.pallas_call(
        _stats_kernel,
        grid=(N, n_h),
        in_specs=[xt_spec, w_spec],
        out_specs=pl.BlockSpec((None, None, 2, Coutp), lambda n, t: (n, t, 0, 0)),
        out_shape=jax.ShapeDtypeStruct((N, n_h, 2, Coutp), jnp.float32),
        compiler_params=cparams,
    )(xt, wt)

    # ---- glue: combine per-tile (sum, sumsq) via Chan, fold BN --------------
    M = float(N * H * W)
    sums = stats[:, :, 0, :].reshape(-1, Coutp)           # (N*n_h, Coutp)
    sqs = stats[:, :, 1, :].reshape(-1, Coutp)
    mean = jnp.sum(sums, axis=0) / M                      # (Coutp,)
    tile_mu = sums / float(rows)
    tile_m2 = sqs - sums * tile_mu                        # one-pass per-tile M2
    var = (jnp.sum(tile_m2, axis=0)
           + jnp.sum(float(rows) * (tile_mu - mean) ** 2, axis=0)) / M
    var = jnp.maximum(var, 0.0)                           # guard fp cancellation
    inv_std = jax.lax.rsqrt(var + EPS)
    gp = jnp.pad(gamma.astype(jnp.float32), (0, Coutp - Cout))
    bp = jnp.pad(beta.astype(jnp.float32), (0, Coutp - Cout))
    scale = (gp * inv_std).reshape(1, Coutp)              # padded chans -> 0
    shift = (bp - mean * gp * inv_std).reshape(1, Coutp)

    # ---- pass 2: conv recompute + folded BN + ReLU (+ fused MaxPool) --------
    if pool:
        Ho, Wo, tho = H // 2, W // 2, th // 2
        out_p = pl.pallas_call(
            _conv_bn_relu_pool_kernel,
            grid=(N, n_h),
            in_specs=[xt_spec, w_spec, chan_spec, chan_spec],
            out_specs=pl.BlockSpec((None, tho, Wo, Coutp),
                                   lambda n, t: (n, t, 0, 0)),
            out_shape=jax.ShapeDtypeStruct((N, Ho, Wo, Coutp), jnp.float32),
            scratch_shapes=[pltpu.VMEM((th, W, Coutp), jnp.float32)],
            compiler_params=cparams,
        )(xt, wt, scale, shift)
    else:
        out_p = pl.pallas_call(
            _conv_bn_relu_kernel,
            grid=(N, n_h),
            in_specs=[xt_spec, w_spec, chan_spec, chan_spec],
            out_specs=pl.BlockSpec((None, th, W, Coutp),
                                   lambda n, t: (n, t, 0, 0)),
            out_shape=jax.ShapeDtypeStruct((N, H, W, Coutp), jnp.float32),
            compiler_params=cparams,
        )(xt, wt, scale, shift)

    # NHWC -> NCHW (full output-sized XLA round trip, kept only because the
    # PyTorch module returns NCHW; prefer returning NHWC if the consumer allows)
    return jnp.transpose(out_p[..., :Cout], (0, 3, 1, 2))


# ----------------------------------------------------------------------------
# Pure-JAX reference (inputs cast to bf16 to mirror the kernel's MXU inputs)
# ----------------------------------------------------------------------------
def _reference(x, weight, bias, gamma, beta, pool):
    xb = x.astype(jnp.bfloat16).astype(jnp.float32)
    wb = weight.astype(jnp.bfloat16).astype(jnp.float32)
    y = jax.lax.conv_general_dilated(
        xb, wb, window_strides=(1, 1), padding=((1, 1), (1, 1)),
        dimension_numbers=("NCHW", "OIHW", "NCHW"))
    y = y + bias[None, :, None, None]
    mean = jnp.mean(y, axis=(0, 2, 3), keepdims=True)
    var = jnp.var(y, axis=(0, 2, 3), keepdims=True)      # biased (training BN)
    y = (y - mean) * jax.lax.rsqrt(var + EPS)
    y = y * gamma[None, :, None, None] + beta[None, :, None, None]
    y = jnp.maximum(y, 0.0)
    if pool:
        y = jax.lax.reduce_window(y, -jnp.inf, jax.lax.max,
                                  (1, 1, 2, 2), (1, 1, 2, 2), "VALID")
    return y


# ----------------------------------------------------------------------------
if __name__ == "__main__":
    key = jax.random.PRNGKey(0)
    k_x, k_w, k_b, k_g, k_be = jax.random.split(key, 5)

    N, Cin, H, W = 2, 4, 16, 16
    Cout, K = 8, 3

    x = jax.random.normal(k_x, (N, Cin, H, W), jnp.float32)
    weight = jax.random.normal(k_w, (Cout, Cin, K, K), jnp.float32) * 0.1
    bias = jax.random.normal(k_b, (Cout,), jnp.float32) * 0.1
    gamma = 1.0 + 0.1 * jax.random.normal(k_g, (Cout,), jnp.float32)
    beta = 0.1 * jax.random.normal(k_be, (Cout,), jnp.float32)

    ok = True
    for pool in (False, True):
        out = jax.block_until_ready(
            conv_bn(x, weight, bias, gamma, beta, pool=pool))
        ref = jax.block_until_ready(
            _reference(x, weight, bias, gamma, beta, pool))
        if out.shape != ref.shape:
            ok = False
            print(f"SHAPE MISMATCH pool={pool}: {out.shape} vs {ref.shape}")
        elif not bool(jnp.allclose(out, ref, atol=2e-3, rtol=2e-3)):
            ok = False
            err = float(jnp.max(jnp.abs(out - ref)))
            print(f"MISMATCH pool={pool}: max err {err}")

    if ok:
        print("KERNEL_OK")
</pallas_src>

<mosaic_0001>
module attributes {stable_mosaic.version = 11 : i64} {
  func.func @_stats_kernel(%arg0: i32, %arg1: i32, %arg2: memref<1x1x18x18x4xbf16, #tpu.memory_space<vmem>>, %arg3: memref<36x128xbf16, #tpu.memory_space<vmem>>, %arg4: memref<1x1x2x128xf32, #tpu.memory_space<vmem>>) attributes {dimension_semantics = [#tpu.dimension_semantics<parallel>, #tpu.dimension_semantics<parallel>], iteration_bounds = array<i64: 2, 1>, scalar_prefetch = 0 : i64, scratch_operands = 0 : i64, tpu.core_type = #tpu.core_type<tc>, window_params = [{transform_indices = @transform_0, window_bounds = array<i64: 1, 1, 18, 18, 4>}, {pipeline_mode = #tpu.pipeline_mode<synchronous>, transform_indices = @transform_1, window_bounds = array<i64: 36, 128>}, {transform_indices = @transform_2, window_bounds = array<i64: 1, 1, 2, 128>}]} {
    %c0 = arith.constant 0 : index
    %c0_0 = arith.constant 0 : index
    %c0_1 = arith.constant 0 : index
    %c0_2 = arith.constant 0 : index
    %c0_3 = arith.constant 0 : index
    %0 = vector.load %arg2[%c0, %c0_0, %c0_1, %c0_2, %c0_3] : memref<1x1x18x18x4xbf16, #tpu.memory_space<vmem>>, vector<1x1x18x18x4xbf16>
    %1 = vector.shape_cast %0 : vector<1x1x18x18x4xbf16> to vector<18x18x4xbf16>
    %2 = vector.extract_strided_slice %1 {offsets = [0, 0, 0], sizes = [16, 16, 4], strides = [1, 1, 1]} : vector<18x18x4xbf16> to vector<16x16x4xbf16>
    %3 = vector.extract_strided_slice %1 {offsets = [0, 1, 0], sizes = [16, 16, 4], strides = [1, 1, 1]} : vector<18x18x4xbf16> to vector<16x16x4xbf16>
    %4 = vector.extract_strided_slice %1 {offsets = [0, 2, 0], sizes = [16, 16, 4], strides = [1, 1, 1]} : vector<18x18x4xbf16> to vector<16x16x4xbf16>
    %5 = vector.extract_strided_slice %1 {offsets = [1, 0, 0], sizes = [16, 16, 4], strides = [1, 1, 1]} : vector<18x18x4xbf16> to vector<16x16x4xbf16>
    %6 = vector.extract_strided_slice %1 {offsets = [1, 1, 0], sizes = [16, 16, 4], strides = [1, 1, 1]} : vector<18x18x4xbf16> to vector<16x16x4xbf16>
    %7 = vector.extract_strided_slice %1 {offsets = [1, 2, 0], sizes = [16, 16, 4], strides = [1, 1, 1]} : vector<18x18x4xbf16> to vector<16x16x4xbf16>
    %8 = vector.extract_strided_slice %1 {offsets = [2, 0, 0], sizes = [16, 16, 4], strides = [1, 1, 1]} : vector<18x18x4xbf16> to vector<16x16x4xbf16>
    %9 = vector.extract_strided_slice %1 {offsets = [2, 1, 0], sizes = [16, 16, 4], strides = [1, 1, 1]} : vector<18x18x4xbf16> to vector<16x16x4xbf16>
    %10 = vector.extract_strided_slice %1 {offsets = [2, 2, 0], sizes = [16, 16, 4], strides = [1, 1, 1]} : vector<18x18x4xbf16> to vector<16x16x4xbf16>
    %11 = tpu.concatenate %2, %3, %4, %5, %6, %7, %8, %9, %10 in 2 : vector<16x16x4xbf16>, vector<16x16x4xbf16>, vector<16x16x4xbf16>, vector<16x16x4xbf16>, vector<16x16x4xbf16>, vector<16x16x4xbf16>, vector<16x16x4xbf16>, vector<16x16x4xbf16>, vector<16x16x4xbf16> -> vector<16x16x36xbf16>
    %12 = vector.shape_cast %11 : vector<16x16x36xbf16> to vector<256x36xbf16>
    %c0_4 = arith.constant 0 : index
    %c0_5 = arith.constant 0 : index
    %13 = vector.load %arg3[%c0_4, %c0_5] : memref<36x128xbf16, #tpu.memory_space<vmem>>, vector<36x128xbf16>
    %cst = arith.constant dense<0.000000e+00> : vector<256x128xf32>
    %14 = tpu.matmul %12, %13, %cst {dimension_numbers = #tpu.dot_dimension_numbers<[1], [0], [0], [1], [0, 0, 1, 1], [], []>} : vector<256x36xbf16>, vector<36x128xbf16>, vector<256x128xf32> -> vector<256x128xf32>
    %cst_6 = arith.constant dense<0.000000e+00> : vector<128xf32>
    %15 = vector.multi_reduction <add>, %14, %cst_6 [0] : vector<256x128xf32> to vector<128xf32>
    %16 = vector.shape_cast %15 : vector<128xf32> to vector<1x128xf32>
    %c0_7 = arith.constant 0 : index
    %c0_8 = arith.constant 0 : index
    %c0_9 = arith.constant 0 : index
    %c0_10 = arith.constant 0 : index
    %17 = vector.load %arg4[%c0_7, %c0_8, %c0_9, %c0_10] : memref<1x1x2x128xf32, #tpu.memory_space<vmem>>, vector<1x1x1x128xf32>
    %18 = vector.shape_cast %17 : vector<1x1x1x128xf32> to vector<1x128xf32>
    %19 = vector.shape_cast %16 : vector<1x128xf32> to vector<1x1x1x128xf32>
    tpu.vector_store %arg4[%c0_7, %c0_8, %c0_9, %c0_10], %19 {strides = array<i32>} : memref<1x1x2x128xf32, #tpu.memory_space<vmem>>, vector<1x1x1x128xf32>,
    %20 = arith.mulf %14, %14 : vector<256x128xf32>
    %cst_11 = arith.constant dense<0.000000e+00> : vector<128xf32>
    %21 = vector.multi_reduction <add>, %20, %cst_11 [0] : vector<256x128xf32> to vector<128xf32>
    %22 = vector.shape_cast %21 : vector<128xf32> to vector<1x128xf32>
    %c0_12 = arith.constant 0 : index
    %c0_13 = arith.constant 0 : index
    %c1 = arith.constant 1 : index
    %c0_14 = arith.constant 0 : index
    %23 = vector.load %arg4[%c0_12, %c0_13, %c1, %c0_14] : memref<1x1x2x128xf32, #tpu.memory_space<vmem>>, vector<1x1x1x128xf32>
    %24 = vector.shape_cast %23 : vector<1x1x1x128xf32> to vector<1x128xf32>
    %25 = vector.shape_cast %22 : vector<1x128xf32> to vector<1x1x1x128xf32>
    tpu.vector_store %arg4[%c0_12, %c0_13, %c1, %c0_14], %25 {strides = array<i32>} : memref<1x1x2x128xf32, #tpu.memory_space<vmem>>, vector<1x1x1x128xf32>,
    return
  }
  func.func @transform_0(%arg0: i32, %arg1: i32) -> (i32, i32, i32, i32, i32) {
    %c0_i32 = arith.constant 0 : i32
    %c0_i32_0 = arith.constant 0 : i32
    %c0_i32_1 = arith.constant 0 : i32
    %c0_i32_2 = arith.constant 0 : i32
    return %arg0, %arg1, %c0_i32, %c0_i32_0, %c0_i32_1 : i32, i32, i32, i32, i32
  }
  func.func @transform_1(%arg0: i32, %arg1: i32) -> (i32, i32) {
    %c0_i32 = arith.constant 0 : i32
    %c0_i32_0 = arith.constant 0 : i32
    %c0_i32_1 = arith.constant 0 : i32
    return %c0_i32, %c0_i32_0 : i32, i32
  }
  func.func @transform_2(%arg0: i32, %arg1: i32) -> (i32, i32, i32, i32) {
    %c0_i32 = arith.constant 0 : i32
    %c0_i32_0 = arith.constant 0 : i32
    %c0_i32_1 = arith.constant 0 : i32
    return %arg0, %arg1, %c0_i32, %c0_i32_0 : i32, i32, i32, i32
  }
}

module attributes {stable_mosaic.version = 11 : i64} {
  func.func @_conv_bn_relu_kernel(%arg0: i32, %arg1: i32, %arg2: memref<1x1x18x18x4xbf16, #tpu.memory_space<vmem>>, %arg3: memref<36x128xbf16, #tpu.memory_space<vmem>>, %arg4: memref<1x128xf32, #tpu.memory_space<vmem>>, %arg5: memref<1x128xf32, #tpu.memory_space<vmem>>, %arg6: memref<1x16x16x128xf32, #tpu.memory_space<vmem>>) attributes {dimension_semantics = [#tpu.dimension_semantics<parallel>, #tpu.dimension_semantics<parallel>], iteration_bounds = array<i64: 2, 1>, scalar_prefetch = 0 : i64, scratch_operands = 0 : i64, tpu.core_type = #tpu.core_type<tc>, window_params = [{transform_indices = @transform_0, window_bounds = array<i64: 1, 1, 18, 18, 4>}, {pipeline_mode = #tpu.pipeline_mode<synchronous>, transform_indices = @transform_1, window_bounds = array<i64: 36, 128>}, {pipeline_mode = #tpu.pipeline_mode<synchronous>, transform_indices = @transform_2, window_bounds = array<i64: 1, 128>}, {pipeline_mode = #tpu.pipeline_mode<synchronous>, transform_indices = @transform_3, window_bounds = array<i64: 1, 128>}, {transform_indices = @transform_4, window_bounds = array<i64: 1, 16, 16, 128>}]} {
    %c0 = arith.constant 0 : index
    %c0_0 = arith.constant 0 : index
    %c0_1 = arith.constant 0 : index
    %c0_2 = arith.constant 0 : index
    %c0_3 = arith.constant 0 : index
    %0 = vector.load %arg2[%c0, %c0_0, %c0_1, %c0_2, %c0_3] : memref<1x1x18x18x4xbf16, #tpu.memory_space<vmem>>, vector<1x1x18x18x4xbf16>
    %1 = vector.shape_cast %0 : vector<1x1x18x18x4xbf16> to vector<18x18x4xbf16>
    %2 = vector.extract_strided_slice %1 {offsets = [0, 0, 0], sizes = [16, 16, 4], strides = [1, 1, 1]} : vector<18x18x4xbf16> to vector<16x16x4xbf16>
    %3 = vector.extract_strided_slice %1 {offsets = [0, 1, 0], sizes = [16, 16, 4], strides = [1, 1, 1]} : vector<18x18x4xbf16> to vector<16x16x4xbf16>
    %4 = vector.extract_strided_slice %1 {offsets = [0, 2, 0], sizes = [16, 16, 4], strides = [1, 1, 1]} : vector<18x18x4xbf16> to vector<16x16x4xbf16>
    %5 = vector.extract_strided_slice %1 {offsets = [1, 0, 0], sizes = [16, 16, 4], strides = [1, 1, 1]} : vector<18x18x4xbf16> to vector<16x16x4xbf16>
    %6 = vector.extract_strided_slice %1 {offsets = [1, 1, 0], sizes = [16, 16, 4], strides = [1, 1, 1]} : vector<18x18x4xbf16> to vector<16x16x4xbf16>
    %7 = vector.extract_strided_slice %1 {offsets = [1, 2, 0], sizes = [16, 16, 4], strides = [1, 1, 1]} : vector<18x18x4xbf16> to vector<16x16x4xbf16>
    %8 = vector.extract_strided_slice %1 {offsets = [2, 0, 0], sizes = [16, 16, 4], strides = [1, 1, 1]} : vector<18x18x4xbf16> to vector<16x16x4xbf16>
    %9 = vector.extract_strided_slice %1 {offsets = [2, 1, 0], sizes = [16, 16, 4], strides = [1, 1, 1]} : vector<18x18x4xbf16> to vector<16x16x4xbf16>
    %10 = vector.extract_strided_slice %1 {offsets = [2, 2, 0], sizes = [16, 16, 4], strides = [1, 1, 1]} : vector<18x18x4xbf16> to vector<16x16x4xbf16>
    %11 = tpu.concatenate %2, %3, %4, %5, %6, %7, %8, %9, %10 in 2 : vector<16x16x4xbf16>, vector<16x16x4xbf16>, vector<16x16x4xbf16>, vector<16x16x4xbf16>, vector<16x16x4xbf16>, vector<16x16x4xbf16>, vector<16x16x4xbf16>, vector<16x16x4xbf16>, vector<16x16x4xbf16> -> vector<16x16x36xbf16>
    %12 = vector.shape_cast %11 : vector<16x16x36xbf16> to vector<256x36xbf16>
    %c0_4 = arith.constant 0 : index
    %c0_5 = arith.constant 0 : index
    %13 = vector.load %arg3[%c0_4, %c0_5] : memref<36x128xbf16, #tpu.memory_space<vmem>>, vector<36x128xbf16>
    %cst = arith.constant dense<0.000000e+00> : vector<256x128xf32>
    %14 = tpu.matmul %12, %13, %cst {dimension_numbers = #tpu.dot_dimension_numbers<[1], [0], [0], [1], [0, 0, 1, 1], [], []>} : vector<256x36xbf16>, vector<36x128xbf16>, vector<256x128xf32> -> vector<256x128xf32>
    %c0_6 = arith.constant 0 : index
    %c0_7 = arith.constant 0 : index
    %15 = vector.load %arg4[%c0_6, %c0_7] : memref<1x128xf32, #tpu.memory_space<vmem>>, vector<1x128xf32>
    %16 = vector.broadcast %15 : vector<1x128xf32> to vector<256x128xf32>
    %17 = arith.mulf %14, %16 : vector<256x128xf32>
    %c0_8 = arith.constant 0 : index
    %c0_9 = arith.constant 0 : index
    %18 = vector.load %arg5[%c0_8, %c0_9] : memref<1x128xf32, #tpu.memory_space<vmem>>, vector<1x128xf32>
    %19 = vector.broadcast %18 : vector<1x128xf32> to vector<256x128xf32>
    %20 = arith.addf %17, %19 : vector<256x128xf32>
    %cst_10 = arith.constant 0.000000e+00 : f32
    %21 = vector.broadcast %cst_10 : f32 to vector<256x128xf32>
    %22 = arith.maximumf %20, %21 : vector<256x128xf32>
    %23 = vector.shape_cast %22 : vector<256x128xf32> to vector<16x16x128xf32>
    %c0_11 = arith.constant 0 : index
    %c0_12 = arith.constant 0 : index
    %c0_13 = arith.constant 0 : index
    %c0_14 = arith.constant 0 : index
    %24 = vector.load %arg6[%c0_11, %c0_12, %c0_13, %c0_14] : memref<1x16x16x128xf32, #tpu.memory_space<vmem>>, vector<1x16x16x128xf32>
    %25 = vector.shape_cast %24 : vector<1x16x16x128xf32> to vector<16x16x128xf32>
    %26 = vector.shape_cast %23 : vector<16x16x128xf32> to vector<1x16x16x128xf32>
    tpu.vector_store %arg6[%c0_11, %c0_12, %c0_13, %c0_14], %26 {strides = array<i32>} : memref<1x16x16x128xf32, #tpu.memory_space<vmem>>, vector<1x16x16x128xf32>,
    return
  }
  func.func @transform_0(%arg0: i32, %arg1: i32) -> (i32, i32, i32, i32, i32) {
    %c0_i32 = arith.constant 0 : i32
    %c0_i32_0 = arith.constant 0 : i32
    %c0_i32_1 = arith.constant 0 : i32
    %c0_i32_2 = arith.constant 0 : i32
    return %arg0, %arg1, %c0_i32, %c0_i32_0, %c0_i32_1 : i32, i32, i32, i32, i32
  }
  func.func @transform_1(%arg0: i32, %arg1: i32) -> (i32, i32) {
    %c0_i32 = arith.constant 0 : i32
    %c0_i32_0 = arith.constant 0 : i32
    %c0_i32_1 = arith.constant 0 : i32
    return %c0_i32, %c0_i32_0 : i32, i32
  }
  func.func @transform_2(%arg0: i32, %arg1: i32) -> (i32, i32) {
    %c0_i32 = arith.constant 0 : i32
    %c0_i32_0 = arith.constant 0 : i32
    %c0_i32_1 = arith.constant 0 : i32
    return %c0_i32, %c0_i32_0 : i32, i32
  }
  func.func @transform_3(%arg0: i32, %arg1: i32) -> (i32, i32) {
    %c0_i32 = arith.constant 0 : i32
    %c0_i32_0 = arith.constant 0 : i32
    %c0_i32_1 = arith.constant 0 : i32
    return %c0_i32, %c0_i32_0 : i32, i32
  }
  func.func @transform_4(%arg0: i32, %arg1: i32) -> (i32, i32, i32, i32) {
    %c0_i32 = arith.constant 0 : i32
    %c0_i32_0 = arith.constant 0 : i32
    %c0_i32_1 = arith.constant 0 : i32
    return %arg0, %arg1, %c0_i32, %c0_i32_0 : i32, i32, i32, i32
  }
}

</mosaic_0001>

<llo_original>
// kernel: conv_bn.2
$region0: #{conv_bn.2}
  #allocation0 [shape = 'u32[]', space=smem, size = 0x4, offset = 0x4, fixed_abs, tag = 'smem constant byte address 0x4 - core index']
  #allocation1 [shape = 'u32[144,128]{1,0:T(1,128)}', space=vmem, size = 0x12000, scoped, tag = 'internal scratch']
  %s0 = inlined_call_operand.vmem [shape: bf16[2,1,18,18,4], index: 0, kind: input, shape index: {}]
  %s1 = inlined_call_operand.vmem [shape: bf16[36,128], index: 1, kind: input, shape index: {}]
  %s2 = inlined_call_operand.vmem [shape: f32[2,1,2,128], index: 2, kind: output, shape index: {}]
  %s3 = sld [smem:[#allocation0]]
  $region41: #{conv_bn.2} parent=0
    _
  %s5 = ssub.s32 1, %s3
  %s6 = scalar_select 0, %s5, %s3
  loop: start=0, step=1, limit=4
  $region2: #{conv_bn.2} parent=0 // loop_pre_header
    _
  $region3: #{conv_bn.2} parent=0 // loop_header
    %s8 = sphi 0, %s12
    %p9 = scmp.ge.s32.totalorder %s8, 4
    %s15 = sphi 0, %s27
    %s16 = sphi 0, %s23
    %s17 = sphi 0, %s15
    %s18 = sphi 0, %s16
    %s19 = sphi 0, %s17
    %s20 = sphi 0, %s18
    %s32 = sphi 0, %s34
    %s35 = sphi 0, %s32
    %s36 = sphi 0, %s35
    %s52 = sphi 0, %s36
    %s56 = sphi 0, %s56
    %s58 = sphi 0, %s56
    %s59 = sphi 0, %s58
    %s73 = sphi 0, %s59
    %s81 = sphi 0, %s83
    %s84 = sphi 0, %s81
    %s85 = sphi 0, %s84
    %s101 = sphi 0, %s85
  $region4: #{conv_bn.2} parent=0 // loop_header_branch
    %11 = sbr.rel (%p9) target = $region8
  $region5: #{conv_bn.2} parent=0 // loop_body
    %s13 = ssub.s32 %s8, 1
    %s14 = ssub.s32 %s8, 2
    %s21 = sadd.s32 1, %s16
    %p22 = scmp.ge.s32.totalorder %s21, 1
    %s23 = scalar_select %p22, 0, %s21
    %s24 = sadd.s32 1, %s15
    %s25 = scalar_select %p22, %s24, %s15
    %p26 = scmp.ge.s32.totalorder %s25, 2
    %s27 = scalar_select %p26, 0, %s25
    %s28 = ssub.s32 %s15, %s27
    %s29 = ssub.s32 %s16, %s23
    %s30 = sor.u32 %s28, %s29
    %p31 = scmp.eq.s32.totalorder %s30, 0
    %s33 = sadd.s32 %s32, 1
    %s34 = scalar_select %p31, %s32, %s33
    %p37 = pneg %p31
    %p38 = scmp.eq.s32.totalorder %s8, 1
    %p39 = por %p37, %p38
    %p40 = scmp.ne.s32.totalorder %s32, %s35
    %p41 = scmp.eq.s32.totalorder %s8, 0
    %p42 = por %p40, %p41
    %p43 = scmp.ne.s32.totalorder %s32, %s35
    %p44 = scmp.eq.s32.totalorder %s13, 1
    %p45 = por %p43, %p44
    %p46 = scmp.ne.s32.totalorder %s35, %s36
    %p47 = scmp.eq.s32.totalorder %s13, 0
    %p48 = por %p46, %p47
    %p49 = scmp.ne.s32.totalorder %s35, %s36
    %p50 = scmp.eq.s32.totalorder %s14, 1
    %p51 = por %p49, %p50
    %p53 = scmp.ne.s32.totalorder %s36, %s52
    %p54 = scmp.eq.s32.totalorder %s14, 0
    %p55 = por %p53, %p54
    %s57 = sadd.s32 %s56, 1
    %p60 = scmp.eq.s32.totalorder %s8, 1
    %p61 = scmp.ne.s32.totalorder %s56, %s58
    %p62 = scmp.eq.s32.totalorder %s8, 0
    %p63 = por %p61, %p62
    %p64 = scmp.ne.s32.totalorder %s56, %s58
    %p65 = scmp.eq.s32.totalorder %s13, 1
    %p66 = por %p64, %p65
    %p67 = scmp.ne.s32.totalorder %s58, %s59
    %p68 = scmp.eq.s32.totalorder %s13, 0
    %p69 = por %p67, %p68
    %p70 = scmp.ne.s32.totalorder %s58, %s59
    %p71 = scmp.eq.s32.totalorder %s14, 1
    %p72 = por %p70, %p71
    %p74 = scmp.ne.s32.totalorder %s59, %s73
    %p75 = scmp.eq.s32.totalorder %s14, 0
    %p76 = por %p74, %p75
    %s77 = ssub.s32 %s15, %s27
    %s78 = ssub.s32 %s16, %s23
    %s79 = sor.u32 %s77, %s78
    %p80 = scmp.eq.s32.totalorder %s79, 0
    %s82 = sadd.s32 %s81, 1
    %s83 = scalar_select %p80, %s81, %s82
    %p86 = pneg %p80
    %p87 = scmp.eq.s32.totalorder %s8, 1
    %p88 = por %p86, %p87
    %p89 = scmp.ne.s32.totalorder %s81, %s84
    %p90 = scmp.eq.s32.totalorder %s8, 0
    %p91 = por %p89, %p90
    %p92 = scmp.ne.s32.totalorder %s81, %s84
    %p93 = scmp.eq.s32.totalorder %s13, 1
    %p94 = por %p92, %p93
    %p95 = scmp.ne.s32.totalorder %s84, %s85
    %p96 = scmp.eq.s32.totalorder %s13, 0
    %p97 = por %p95, %p96
    %p98 = scmp.ne.s32.totalorder %s84, %s85
    %p99 = scmp.eq.s32.totalorder %s14, 1
    %p100 = por %p98, %p99
    %p102 = scmp.ne.s32.totalorder %s85, %s101
    %p103 = scmp.eq.s32.totalorder %s14, 0
    %p104 = por %p102, %p103
    %p105 = scmp.le.s32.totalorder 1, %s8
    %p106 = scmp.lt.s32.totalorder %s8, 3
    %p107 = pnand %p105, %p106
    %p108 = pneg %p107
    // Predicated region
    $region9: #{conv_bn.2} parent=5 // pred_check
      _
    $region10: #{conv_bn.2} parent=5 // pred_check_branch
      %110 = sbr.rel (%p107) target = $region12
    $region11: #{conv_bn.2} parent=5 // pred_region
      %s111 = ssub.s32 %s8, 1
      // Predicated region
      $region13: #{conv_bn.2} parent=11 // pred_check
        %p112 = pneg %p69
      $region14: #{conv_bn.2} parent=11 // pred_check_branch
        %114 = sbr.rel (%p112) target = $region16
      $region15: #{conv_bn.2} parent=11 // pred_region
        _
      $region16: #{conv_bn.2} parent=11 // pred_fallthru
        _
    $region12: #{conv_bn.2} parent=5 // pred_fallthru
      _
    %p115 = scmp.lt.s32.totalorder %s8, 2
    // Predicated region
    $region17: #{conv_bn.2} parent=5 // pred_check
      %p116 = pneg %p115
    $region18: #{conv_bn.2} parent=5 // pred_check_branch
      %118 = sbr.rel (%p116) target = $region20
    $region19: #{conv_bn.2} parent=5 // pred_region
      // Predicated region
      $region21: #{conv_bn.2} parent=19 // pred_check
        %p119 = pneg %p42
      $region22: #{conv_bn.2} parent=19 // pred_check_branch
        %121 = sbr.rel (%p119) target = $region24
      $region23: #{conv_bn.2} parent=19 // pred_region
        %p122 = scmp.lt.s32.totalorder %s15, 1
        %s123 = scalar_select %p122, %s15, 1
        %p124 = scmp.lt.s32.totalorder %s16, 0
        %s125 = scalar_select %p124, %s16, 0
        %s126 = smul.addr %s125, 54
        %s127 = smul.addr %s123, 54
        %s128 = sadd.s32 %s126, %s127
        %s129 = smul.addr %s128, 4
        %s130 = scalar_lea.vmem %s0, %s129
      $region24: #{conv_bn.2} parent=19 // pred_fallthru
        _
    $region20: #{conv_bn.2} parent=5 // pred_fallthru
      _
    %p131 = scmp.le.s32.totalorder 1, %s8
    %p132 = scmp.lt.s32.totalorder %s8, 3
    %p133 = pnand %p131, %p132
    %p134 = pneg %p133
    // Predicated region
    $region25: #{conv_bn.2} parent=5 // pred_check
      _
    $region26: #{conv_bn.2} parent=5 // pred_check_branch
      %136 = sbr.rel (%p133) target = $region28
    $region27: #{conv_bn.2} parent=5 // pred_region
      %s137 = ssub.s32 %s8, 1
      %p138 = scmp.lt.s32.totalorder %s17, 1
      %s139 = scalar_select %p138, %s17, 1
      %p140 = scmp.lt.s32.totalorder %s18, 0
      %s141 = scalar_select %p140, %s18, 0
      %s142 = smul.addr %s141, 54
      %s143 = smul.addr %s139, 54
      %s144 = sadd.s32 %s142, %s143
      %s145 = smul.addr %s144, 4
      %s146 = scalar_lea.vmem %s0, %s145
      %p147 = pneg %p48
      %p148 = pneg %p45
      %p149 = pneg %p69
      %p150 = pneg %p66
      %p151 = pneg %p97
      %p152 = pneg %p94
      %p153 = scmp.lt.s32.totalorder %s17, 1
      %s154 = scalar_select %p153, %s17, 1
      %p155 = scmp.lt.s32.totalorder %s18, 0
      %s156 = scalar_select %p155, %s18, 0
      %s157 = sadd.s32 %s156, %s154
      %s158 = smul.addr %s157, 2
      %s159 = scalar_lea.vmem %s2, %s158
      %p160 = scmp.lt.s32.totalorder %s17, 1
      %s161 = scalar_select %p160, %s17, 1
      %p162 = scmp.lt.s32.totalorder %s18, 0
      %s163 = scalar_select %p162, %s18, 0
      %s164 = smul.addr %s163, 54
      %s165 = smul.addr %s161, 54
      %s166 = sadd.s32 %s164, %s165
      %s167 = smul.addr %s166, 4
      %s168 = scalar_lea.vmem %s0, %s167
      %p169 = scmp.lt.s32.totalorder %s17, 1
      %s170 = scalar_select %p169, %s17, 1
      %p171 = scmp.lt.s32.totalorder %s18, 0
      %s172 = scalar_select %p171, %s18, 0
      %s173 = sadd.s32 %s172, %s170
      %s174 = smul.addr %s173, 2
      %s175 = scalar_lea.vmem %s2, %s174
      %v177 = vld [vmem:[%s168] sm:$0xf]
      %v178 = vld [vmem:[%s168 + $0x4] sm:$0xf]
      %v179 = vld [vmem:[%s168 + $0x8] sm:$0x1]
      %v180 = vld [vmem:[%s168 + $0xc] sm:$0xf]
      %v181 = vld [vmem:[%s168 + $0x10] sm:$0xf]
      %v182 = vld [vmem:[%s168 + $0x14] sm:$0x1]
      %v183 = vld [vmem:[%s168 + $0x18] sm:$0xf]
      %v184 = vld [vmem:[%s168 + $0x1c] sm:$0xf]
      %v185 = vld [vmem:[%s168 + $0x20] sm:$0x1]
      %v186 = vld [vmem:[%s168 + $0x24] sm:$0xf]
      %v187 = vld [vmem:[%s168 + $0x28] sm:$0xf]
      %v188 = vld [vmem:[%s168 + $0x2c] sm:$0x1]
      %v189 = vld [vmem:[%s168 + $0x30] sm:$0xf]
      %v190 = vld [vmem:[%s168 + $0x34] sm:$0xf]
      %v191 = vld [vmem:[%s168 + $0x38] sm:$0x1]
      %v192 = vld [vmem:[%s168 + $0x3c] sm:$0xf]
      %v193 = vld [vmem:[%s168 + $0x40] sm:$0xf]
      %v194 = vld [vmem:[%s168 + $0x44] sm:$0x1]
      %v195 = vld [vmem:[%s168 + $0x48] sm:$0xf]
      %v196 = vld [vmem:[%s168 + $0x4c] sm:$0xf]
      %v197 = vld [vmem:[%s168 + $0x50] sm:$0x1]
      %v198 = vld [vmem:[%s168 + $0x54] sm:$0xf]
      %v199 = vld [vmem:[%s168 + $0x58] sm:$0xf]
      %v200 = vld [vmem:[%s168 + $0x5c] sm:$0x1]
      %v201 = vld [vmem:[%s168 + $0x60] sm:$0xf]
      %v202 = vld [vmem:[%s168 + $0x64] sm:$0xf]
      %v203 = vld [vmem:[%s168 + $0x68] sm:$0x1]
      %v204 = vld [vmem:[%s168 + $0x6c] sm:$0xf]
      %v205 = vld [vmem:[%s168 + $0x70] sm:$0xf]
      %v206 = vld [vmem:[%s168 + $0x74] sm:$0x1]
      %v207 = vld [vmem:[%s168 + $0x78] sm:$0xf]
      %v208 = vld [vmem:[%s168 + $0x7c] sm:$0xf]
      %v209 = vld [vmem:[%s168 + $0x80] sm:$0x1]
      %v210 = vld [vmem:[%s168 + $0x84] sm:$0xf]
      %v211 = vld [vmem:[%s168 + $0x88] sm:$0xf]
      %v212 = vld [vmem:[%s168 + $0x8c] sm:$0x1]
      %v213 = vld [vmem:[%s168 + $0x90] sm:$0xf]
      %v214 = vld [vmem:[%s168 + $0x94] sm:$0xf]
      %v215 = vld [vmem:[%s168 + $0x98] sm:$0x1]
      %v216 = vld [vmem:[%s168 + $0x9c] sm:$0xf]
      %v217 = vld [vmem:[%s168 + $0xa0] sm:$0xf]
      %v218 = vld [vmem:[%s168 + $0xa4] sm:$0x1]
      %v219 = vld [vmem:[%s168 + $0xa8] sm:$0xf]
      %v220 = vld [vmem:[%s168 + $0xac] sm:$0xf]
      %v221 = vld [vmem:[%s168 + $0xb0] sm:$0x1]
      %v222 = vld [vmem:[%s168 + $0xb4] sm:$0xf]
      %v223 = vld [vmem:[%s168 + $0xb8] sm:$0xf]
      %v224 = vld [vmem:[%s168 + $0xbc] sm:$0x1]
      %v225 = vld [vmem:[%s168 + $0xc0] sm:$0xf]
      %v226 = vld [vmem:[%s168 + $0xc4] sm:$0xf]
      %v227 = vld [vmem:[%s168 + $0xc8] sm:$0x1]
      %v228 = vld [vmem:[%s168 + $0xcc] sm:$0xf]
      %v229 = vld [vmem:[%s168 + $0xd0] sm:$0xf]
      %v230 = vld [vmem:[%s168 + $0xd4] sm:$0x1]
      %v263 = vunpack.c.l.b16 %v177
      %v264 = vunpack.c.l.b16 %v178
      %v265 = vunpack.c.l.b16 %v180
      %v266 = vunpack.c.l.b16 %v181
      %v267 = vunpack.c.l.b16 %v183
      %v268 = vunpack.c.l.b16 %v184
      %v269 = vunpack.c.l.b16 %v186
      %v270 = vunpack.c.l.b16 %v187
      %v271 = vunpack.c.l.b16 %v189
      %v272 = vunpack.c.l.b16 %v190
      %v273 = vunpack.c.l.b16 %v192
      %v274 = vunpack.c.l.b16 %v193
      %v275 = vunpack.c.l.b16 %v195
      %v276 = vunpack.c.l.b16 %v196
      %v277 = vunpack.c.l.b16 %v198
      %v278 = vunpack.c.l.b16 %v199
      %v279 = vunpack.c.l.b16 %v201
      %v280 = vunpack.c.l.b16 %v202
      %v281 = vunpack.c.l.b16 %v204
      %v282 = vunpack.c.l.b16 %v205
      %v283 = vunpack.c.l.b16 %v207
      %v284 = vunpack.c.l.b16 %v208
      %v285 = vunpack.c.l.b16 %v210
      %v286 = vunpack.c.l.b16 %v211
      %v287 = vunpack.c.l.b16 %v213
      %v288 = vunpack.c.l.b16 %v214
      %v289 = vunpack.c.l.b16 %v216
      %v290 = vunpack.c.l.b16 %v217
      %v291 = vunpack.c.l.b16 %v219
      %v292 = vunpack.c.l.b16 %v220
      %v293 = vunpack.c.l.b16 %v222
      %v294 = vunpack.c.l.b16 %v223
      %v295 = vpack.c.b16 %v264, %v263
      %v296 = vpack.c.b16 %v266, %v265
      %v297 = vpack.c.b16 %v268, %v267
      %v298 = vpack.c.b16 %v270, %v269
      %v299 = vpack.c.b16 %v272, %v271
      %v300 = vpack.c.b16 %v274, %v273
      %v301 = vpack.c.b16 %v276, %v275
      %v302 = vpack.c.b16 %v278, %v277
      %v303 = vpack.c.b16 %v280, %v279
      %v304 = vpack.c.b16 %v282, %v281
      %v305 = vpack.c.b16 %v284, %v283
      %v306 = vpack.c.b16 %v286, %v285
      %v307 = vpack.c.b16 %v288, %v287
      %v308 = vpack.c.b16 %v290, %v289
      %v309 = vpack.c.b16 %v292, %v291
      %v310 = vpack.c.b16 %v294, %v293
      %v327 = vunpack.c.l.b16 %v179
      %v328 = vunpack.c.l.b16 %v182
      %v329 = vunpack.c.l.b16 %v185
      %v330 = vunpack.c.l.b16 %v188
      %v331 = vunpack.c.l.b16 %v191
      %v332 = vunpack.c.l.b16 %v194
      %v333 = vunpack.c.l.b16 %v197
      %v334 = vunpack.c.l.b16 %v200
      %v335 = vunpack.c.l.b16 %v203
      %v336 = vunpack.c.l.b16 %v206
      %v337 = vunpack.c.l.b16 %v209
      %v338 = vunpack.c.l.b16 %v212
      %v339 = vunpack.c.l.b16 %v215
      %v340 = vunpack.c.l.b16 %v218
      %v341 = vunpack.c.l.b16 %v221
      %v342 = vunpack.c.l.b16 %v224
      %v343 = vpack.c.b16 %v327, %v327
      %v344 = vpack.c.b16 %v328, %v328
      %v345 = vpack.c.b16 %v329, %v329
      %v346 = vpack.c.b16 %v330, %v330
      %v347 = vpack.c.b16 %v331, %v331
      %v348 = vpack.c.b16 %v332, %v332
      %v349 = vpack.c.b16 %v333, %v333
      %v350 = vpack.c.b16 %v334, %v334
      %v351 = vpack.c.b16 %v335, %v335
      %v352 = vpack.c.b16 %v336, %v336
      %v353 = vpack.c.b16 %v337, %v337
      %v354 = vpack.c.b16 %v338, %v338
      %v355 = vpack.c.b16 %v339, %v339
      %v356 = vpack.c.b16 %v340, %v340
      %v357 = vpack.c.b16 %v341, %v341
      %v358 = vpack.c.b16 %v342, %v342
      %vm359 = vsmask.f32 7424
      %v361 = vshrl.u32 %v295, 16
      %v363 = vshll.u32 %v295, 16
      %v365 = vrot.slane %v363, 1
      %v366 = vor.u32 %v361, %v365
      %v368 = vshll.u32 %v343, 16
      %v370 = vrot.slane %v368, 1
      %v371 = vsel %vm359, %v366, %v370
      %v373 = vshrl.u32 %v296, 16
      %v375 = vshll.u32 %v296, 16
      %v377 = vrot.slane %v375, 1
      %v378 = vor.u32 %v373, %v377
      %v380 = vshll.u32 %v344, 16
      %v382 = vrot.slane %v380, 1
      %v383 = vsel %vm359, %v378, %v382
      %v385 = vshrl.u32 %v297, 16
      %v387 = vshll.u32 %v297, 16
      %v389 = vrot.slane %v387, 1
      %v390 = vor.u32 %v385, %v389
      %v392 = vshll.u32 %v345, 16
      %v394 = vrot.slane %v392, 1
      %v395 = vsel %vm359, %v390, %v394
      %v397 = vshrl.u32 %v298, 16
      %v399 = vshll.u32 %v298, 16
      %v401 = vrot.slane %v399, 1
      %v402 = vor.u32 %v397, %v401
      %v404 = vshll.u32 %v346, 16
      %v406 = vrot.slane %v404, 1
      %v407 = vsel %vm359, %v402, %v406
      %v409 = vshrl.u32 %v299, 16
      %v411 = vshll.u32 %v299, 16
      %v413 = vrot.slane %v411, 1
      %v414 = vor.u32 %v409, %v413
      %v416 = vshll.u32 %v347, 16
      %v418 = vrot.slane %v416, 1
      %v419 = vsel %vm359, %v414, %v418
      %v421 = vshrl.u32 %v300, 16
      %v423 = vshll.u32 %v300, 16
      %v425 = vrot.slane %v423, 1
      %v426 = vor.u32 %v421, %v425
      %v428 = vshll.u32 %v348, 16
      %v430 = vrot.slane %v428, 1
      %v431 = vsel %vm359, %v426, %v430
      %v433 = vshrl.u32 %v301, 16
      %v435 = vshll.u32 %v301, 16
      %v437 = vrot.slane %v435, 1
      %v438 = vor.u32 %v433, %v437
      %v440 = vshll.u32 %v349, 16
      %v442 = vrot.slane %v440, 1
      %v443 = vsel %vm359, %v438, %v442
      %v445 = vshrl.u32 %v302, 16
      %v447 = vshll.u32 %v302, 16
      %v449 = vrot.slane %v447, 1
      %v450 = vor.u32 %v445, %v449
      %v452 = vshll.u32 %v350, 16
      %v454 = vrot.slane %v452, 1
      %v455 = vsel %vm359, %v450, %v454
      %v457 = vshrl.u32 %v303, 16
      %v459 = vshll.u32 %v303, 16
      %v461 = vrot.slane %v459, 1
      %v462 = vor.u32 %v457, %v461
      %v464 = vshll.u32 %v351, 16
      %v466 = vrot.slane %v464, 1
      %v467 = vsel %vm359, %v462, %v466
      %v469 = vshrl.u32 %v304, 16
      %v471 = vshll.u32 %v304, 16
      %v473 = vrot.slane %v471, 1
      %v474 = vor.u32 %v469, %v473
      %v476 = vshll.u32 %v352, 16
      %v478 = vrot.slane %v476, 1
      %v479 = vsel %vm359, %v474, %v478
      %v481 = vshrl.u32 %v305, 16
      %v483 = vshll.u32 %v305, 16
      %v485 = vrot.slane %v483, 1
      %v486 = vor.u32 %v481, %v485
      %v488 = vshll.u32 %v353, 16
      %v490 = vrot.slane %v488, 1
      %v491 = vsel %vm359, %v486, %v490
      %v493 = vshrl.u32 %v306, 16
      %v495 = vshll.u32 %v306, 16
      %v497 = vrot.slane %v495, 1
      %v498 = vor.u32 %v493, %v497
      %v500 = vshll.u32 %v354, 16
      %v502 = vrot.slane %v500, 1
      %v503 = vsel %vm359, %v498, %v502
      %v505 = vshrl.u32 %v307, 16
      %v507 = vshll.u32 %v307, 16
      %v509 = vrot.slane %v507, 1
      %v510 = vor.u32 %v505, %v509
      %v512 = vshll.u32 %v355, 16
      %v514 = vrot.slane %v512, 1
      %v515 = vsel %vm359, %v510, %v514
      %v517 = vshrl.u32 %v308, 16
      %v519 = vshll.u32 %v308, 16
      %v521 = vrot.slane %v519, 1
      %v522 = vor.u32 %v517, %v521
      %v524 = vshll.u32 %v356, 16
      %v526 = vrot.slane %v524, 1
      %v527 = vsel %vm359, %v522, %v526
      %v529 = vshrl.u32 %v309, 16
      %v531 = vshll.u32 %v309, 16
      %v533 = vrot.slane %v531, 1
      %v534 = vor.u32 %v529, %v533
      %v536 = vshll.u32 %v357, 16
      %v538 = vrot.slane %v536, 1
      %v539 = vsel %vm359, %v534, %v538
      %v541 = vshrl.u32 %v310, 16
      %v543 = vshll.u32 %v310, 16
      %v545 = vrot.slane %v543, 1
      %v546 = vor.u32 %v541, %v545
      %v548 = vshll.u32 %v358, 16
      %v550 = vrot.slane %v548, 1
      %v551 = vsel %vm359, %v546, %v550
      %552 = vrot.lane.b32.xlu0 %v371, 4
      %v553 = vpop.permute.xlu0 %552
      %554 = vrot.lane.b32.xlu0 %v383, 4
      %v555 = vpop.permute.xlu0 %554
      %556 = vrot.lane.b32.xlu0 %v395, 4
      %v557 = vpop.permute.xlu0 %556
      %558 = vrot.lane.b32.xlu0 %v407, 4
      %v559 = vpop.permute.xlu0 %558
      %560 = vrot.lane.b32.xlu0 %v419, 4
      %v561 = vpop.permute.xlu0 %560
      %562 = vrot.lane.b32.xlu0 %v431, 4
      %v563 = vpop.permute.xlu0 %562
      %564 = vrot.lane.b32.xlu0 %v443, 4
      %v565 = vpop.permute.xlu0 %564
      %566 = vrot.lane.b32.xlu0 %v455, 4
      %v567 = vpop.permute.xlu0 %566
      %568 = vrot.lane.b32.xlu0 %v467, 4
      %v569 = vpop.permute.xlu0 %568
      %570 = vrot.lane.b32.xlu0 %v479, 4
      %v571 = vpop.permute.xlu0 %570
      %572 = vrot.lane.b32.xlu0 %v491, 4
      %v573 = vpop.permute.xlu0 %572
      %574 = vrot.lane.b32.xlu0 %v503, 4
      %v575 = vpop.permute.xlu0 %574
      %576 = vrot.lane.b32.xlu0 %v515, 4
      %v577 = vpop.permute.xlu0 %576
      %578 = vrot.lane.b32.xlu0 %v527, 4
      %v579 = vpop.permute.xlu0 %578
      %580 = vrot.lane.b32.xlu0 %v539, 4
      %v581 = vpop.permute.xlu0 %580
      %582 = vrot.lane.b32.xlu0 %v551, 4
      %v583 = vpop.permute.xlu0 %582
      %vm584 = vcmask 1046528
      %v585 = vrot.slane %v295, 1
      %v586 = vrot.slane %v343, 1
      %v587 = vsel %vm584, %v585, %v586
      %v588 = vrot.slane %v296, 1
      %v589 = vrot.slane %v344, 1
      %v590 = vsel %vm584, %v588, %v589
      %v591 = vrot.slane %v297, 1
      %v592 = vrot.slane %v345, 1
      %v593 = vsel %vm584, %v591, %v592
      %v594 = vrot.slane %v298, 1
      %v595 = vrot.slane %v346, 1
      %v596 = vsel %vm584, %v594, %v595
      %v597 = vrot.slane %v299, 1
      %v598 = vrot.slane %v347, 1
      %v599 = vsel %vm584, %v597, %v598
      %v600 = vrot.slane %v300, 1
      %v601 = vrot.slane %v348, 1
      %v602 = vsel %vm584, %v600, %v601
      %v603 = vrot.slane %v301, 1
      %v604 = vrot.slane %v349, 1
      %v605 = vsel %vm584, %v603, %v604
      %v606 = vrot.slane %v302, 1
      %v607 = vrot.slane %v350, 1
      %v608 = vsel %vm584, %v606, %v607
      %v609 = vrot.slane %v303, 1
      %v610 = vrot.slane %v351, 1
      %v611 = vsel %vm584, %v609, %v610
      %v612 = vrot.slane %v304, 1
      %v613 = vrot.slane %v352, 1
      %v614 = vsel %vm584, %v612, %v613
      %v615 = vrot.slane %v305, 1
      %v616 = vrot.slane %v353, 1
      %v617 = vsel %vm584, %v615, %v616
      %v618 = vrot.slane %v306, 1
      %v619 = vrot.slane %v354, 1
      %v620 = vsel %vm584, %v618, %v619
      %v621 = vrot.slane %v307, 1
      %v622 = vrot.slane %v355, 1
      %v623 = vsel %vm584, %v621, %v622
      %v624 = vrot.slane %v308, 1
      %v625 = vrot.slane %v356, 1
      %v626 = vsel %vm584, %v624, %v625
      %v627 = vrot.slane %v309, 1
      %v628 = vrot.slane %v357, 1
      %v629 = vsel %vm584, %v627, %v628
      %v630 = vrot.slane %v310, 1
      %v631 = vrot.slane %v358, 1
      %v632 = vsel %vm584, %v630, %v631
      %633 = vrot.lane.b32.xlu0 %v587, 8
      %v634 = vpop.permute.xlu0 %633
      %635 = vrot.lane.b32.xlu0 %v590, 8
      %v636 = vpop.permute.xlu0 %635
      %637 = vrot.lane.b32.xlu0 %v593, 8
      %v638 = vpop.permute.xlu0 %637
      %639 = vrot.lane.b32.xlu0 %v596, 8
      %v640 = vpop.permute.xlu0 %639
      %641 = vrot.lane.b32.xlu0 %v599, 8
      %v642 = vpop.permute.xlu0 %641
      %643 = vrot.lane.b32.xlu0 %v602, 8
      %v644 = vpop.permute.xlu0 %643
      %645 = vrot.lane.b32.xlu0 %v605, 8
      %v646 = vpop.permute.xlu0 %645
      %647 = vrot.lane.b32.xlu0 %v608, 8
      %v648 = vpop.permute.xlu0 %647
      %649 = vrot.lane.b32.xlu0 %v611, 8
      %v650 = vpop.permute.xlu0 %649
      %651 = vrot.lane.b32.xlu0 %v614, 8
      %v652 = vpop.permute.xlu0 %651
      %653 = vrot.lane.b32.xlu0 %v617, 8
      %v654 = vpop.permute.xlu0 %653
      %655 = vrot.lane.b32.xlu0 %v620, 8
      %v656 = vpop.permute.xlu0 %655
      %657 = vrot.lane.b32.xlu0 %v623, 8
      %v658 = vpop.permute.xlu0 %657
      %659 = vrot.lane.b32.xlu0 %v626, 8
      %v660 = vpop.permute.xlu0 %659
      %661 = vrot.lane.b32.xlu0 %v629, 8
      %v662 = vpop.permute.xlu0 %661
      %663 = vrot.lane.b32.xlu0 %v632, 8
      %v664 = vpop.permute.xlu0 %663
      %v667 = vunpack.c.l.b16 %v225
      %v668 = vunpack.c.l.b16 %v226
      %v669 = vpack.c.b16 %v668, %v667
      %670 = vrot.lane.b32.xlu0 %v296, 12
      %v671 = vpop.permute.xlu0 %670
      %672 = vrot.lane.b32.xlu0 %v297, 12
      %v673 = vpop.permute.xlu0 %672
      %674 = vrot.lane.b32.xlu0 %v298, 12
      %v675 = vpop.permute.xlu0 %674
      %676 = vrot.lane.b32.xlu0 %v299, 12
      %v677 = vpop.permute.xlu0 %676
      %678 = vrot.lane.b32.xlu0 %v300, 12
      %v679 = vpop.permute.xlu0 %678
      %680 = vrot.lane.b32.xlu0 %v301, 12
      %v681 = vpop.permute.xlu0 %680
      %682 = vrot.lane.b32.xlu0 %v302, 12
      %v683 = vpop.permute.xlu0 %682
      %684 = vrot.lane.b32.xlu0 %v303, 12
      %v685 = vpop.permute.xlu0 %684
      %686 = vrot.lane.b32.xlu0 %v304, 12
      %v687 = vpop.permute.xlu0 %686
      %688 = vrot.lane.b32.xlu0 %v305, 12
      %v689 = vpop.permute.xlu0 %688
      %690 = vrot.lane.b32.xlu0 %v306, 12
      %v691 = vpop.permute.xlu0 %690
      %692 = vrot.lane.b32.xlu0 %v307, 12
      %v693 = vpop.permute.xlu0 %692
      %694 = vrot.lane.b32.xlu0 %v308, 12
      %v695 = vpop.permute.xlu0 %694
      %696 = vrot.lane.b32.xlu0 %v309, 12
      %v697 = vpop.permute.xlu0 %696
      %698 = vrot.lane.b32.xlu0 %v310, 12
      %v699 = vpop.permute.xlu0 %698
      %700 = vrot.lane.b32.xlu0 %v669, 12
      %v701 = vpop.permute.xlu0 %700
      %v703 = vunpack.c.l.b16 %v227
      %v704 = vpack.c.b16 %v703, %v703
      %v706 = vshrl.u32 %v669, 16
      %v708 = vshll.u32 %v669, 16
      %v710 = vrot.slane %v708, 1
      %v711 = vor.u32 %v706, %v710
      %v713 = vshll.u32 %v704, 16
      %v715 = vrot.slane %v713, 1
      %v716 = vsel %vm359, %v711, %v715
      %717 = vrot.lane.b32.xlu0 %v383, 16
      %v718 = vpop.permute.xlu0 %717
      %719 = vrot.lane.b32.xlu0 %v395, 16
      %v720 = vpop.permute.xlu0 %719
      %721 = vrot.lane.b32.xlu0 %v407, 16
      %v722 = vpop.permute.xlu0 %721
      %723 = vrot.lane.b32.xlu0 %v419, 16
      %v724 = vpop.permute.xlu0 %723
      %725 = vrot.lane.b32.xlu0 %v431, 16
      %v726 = vpop.permute.xlu0 %725
      %727 = vrot.lane.b32.xlu0 %v443, 16
      %v728 = vpop.permute.xlu0 %727
      %729 = vrot.lane.b32.xlu0 %v455, 16
      %v730 = vpop.permute.xlu0 %729
      %731 = vrot.lane.b32.xlu0 %v467, 16
      %v732 = vpop.permute.xlu0 %731
      %733 = vrot.lane.b32.xlu0 %v479, 16
      %v734 = vpop.permute.xlu0 %733
      %735 = vrot.lane.b32.xlu0 %v491, 16
      %v736 = vpop.permute.xlu0 %735
      %737 = vrot.lane.b32.xlu0 %v503, 16
      %v738 = vpop.permute.xlu0 %737
      %739 = vrot.lane.b32.xlu0 %v515, 16
      %v740 = vpop.permute.xlu0 %739
      %741 = vrot.lane.b32.xlu0 %v527, 16
      %v742 = vpop.permute.xlu0 %741
      %743 = vrot.lane.b32.xlu0 %v539, 16
      %v744 = vpop.permute.xlu0 %743
      %745 = vrot.lane.b32.xlu0 %v551, 16
      %v746 = vpop.permute.xlu0 %745
      %747 = vrot.lane.b32.xlu0 %v716, 16
      %v748 = vpop.permute.xlu0 %747
      %v749 = vrot.slane %v669, 1
      %v750 = vrot.slane %v704, 1
      %v751 = vsel %vm584, %v749, %v750
      %752 = vrot.lane.b32.xlu0 %v590, 20
      %v753 = vpop.permute.xlu0 %752
      %754 = vrot.lane.b32.xlu0 %v593, 20
      %v755 = vpop.permute.xlu0 %754
      %756 = vrot.lane.b32.xlu0 %v596, 20
      %v757 = vpop.permute.xlu0 %756
      %758 = vrot.lane.b32.xlu0 %v599, 20
      %v759 = vpop.permute.xlu0 %758
      %760 = vrot.lane.b32.xlu0 %v602, 20
      %v761 = vpop.permute.xlu0 %760
      %762 = vrot.lane.b32.xlu0 %v605, 20
      %v763 = vpop.permute.xlu0 %762
      %764 = vrot.lane.b32.xlu0 %v608, 20
      %v765 = vpop.permute.xlu0 %764
      %766 = vrot.lane.b32.xlu0 %v611, 20
      %v767 = vpop.permute.xlu0 %766
      %768 = vrot.lane.b32.xlu0 %v614, 20
      %v769 = vpop.permute.xlu0 %768
      %770 = vrot.lane.b32.xlu0 %v617, 20
      %v771 = vpop.permute.xlu0 %770
      %772 = vrot.lane.b32.xlu0 %v620, 20
      %v773 = vpop.permute.xlu0 %772
      %774 = vrot.lane.b32.xlu0 %v623, 20
      %v775 = vpop.permute.xlu0 %774
      %776 = vrot.lane.b32.xlu0 %v626, 20
      %v777 = vpop.permute.xlu0 %776
      %778 = vrot.lane.b32.xlu0 %v629, 20
      %v779 = vpop.permute.xlu0 %778
      %780 = vrot.lane.b32.xlu0 %v632, 20
      %v781 = vpop.permute.xlu0 %780
      %782 = vrot.lane.b32.xlu0 %v751, 20
      %v783 = vpop.permute.xlu0 %782
      %v786 = vunpack.c.l.b16 %v228
      %v787 = vunpack.c.l.b16 %v229
      %v788 = vpack.c.b16 %v787, %v786
      %789 = vrot.lane.b32.xlu0 %v297, 24
      %v790 = vpop.permute.xlu0 %789
      %791 = vrot.lane.b32.xlu0 %v298, 24
      %v792 = vpop.permute.xlu0 %791
      %793 = vrot.lane.b32.xlu0 %v299, 24
      %v794 = vpop.permute.xlu0 %793
      %795 = vrot.lane.b32.xlu0 %v300, 24
      %v796 = vpop.permute.xlu0 %795
      %797 = vrot.lane.b32.xlu0 %v301, 24
      %v798 = vpop.permute.xlu0 %797
      %799 = vrot.lane.b32.xlu0 %v302, 24
      %v800 = vpop.permute.xlu0 %799
      %801 = vrot.lane.b32.xlu0 %v303, 24
      %v802 = vpop.permute.xlu0 %801
      %803 = vrot.lane.b32.xlu0 %v304, 24
      %v804 = vpop.permute.xlu0 %803
      %805 = vrot.lane.b32.xlu0 %v305, 24
      %v806 = vpop.permute.xlu0 %805
      %807 = vrot.lane.b32.xlu0 %v306, 24
      %v808 = vpop.permute.xlu0 %807
      %809 = vrot.lane.b32.xlu0 %v307, 24
      %v810 = vpop.permute.xlu0 %809
      %811 = vrot.lane.b32.xlu0 %v308, 24
      %v812 = vpop.permute.xlu0 %811
      %813 = vrot.lane.b32.xlu0 %v309, 24
      %v814 = vpop.permute.xlu0 %813
      %815 = vrot.lane.b32.xlu0 %v310, 24
      %v816 = vpop.permute.xlu0 %815
      %817 = vrot.lane.b32.xlu0 %v669, 24
      %v818 = vpop.permute.xlu0 %817
      %819 = vrot.lane.b32.xlu0 %v788, 24
      %v820 = vpop.permute.xlu0 %819
      %v822 = vunpack.c.l.b16 %v230
      %v823 = vpack.c.b16 %v822, %v822
      %v825 = vshrl.u32 %v788, 16
      %v827 = vshll.u32 %v788, 16
      %v829 = vrot.slane %v827, 1
      %v830 = vor.u32 %v825, %v829
      %v832 = vshll.u32 %v823, 16
      %v834 = vrot.slane %v832, 1
      %v835 = vsel %vm359, %v830, %v834
      %836 = vrot.lane.b32.xlu0 %v395, 28
      %v837 = vpop.permute.xlu0 %836
      %838 = vrot.lane.b32.xlu0 %v407, 28
      %v839 = vpop.permute.xlu0 %838
      %840 = vrot.lane.b32.xlu0 %v419, 28
      %v841 = vpop.permute.xlu0 %840
      %842 = vrot.lane.b32.xlu0 %v431, 28
      %v843 = vpop.permute.xlu0 %842
      %844 = vrot.lane.b32.xlu0 %v443, 28
      %v845 = vpop.permute.xlu0 %844
      %846 = vrot.lane.b32.xlu0 %v455, 28
      %v847 = vpop.permute.xlu0 %846
      %848 = vrot.lane.b32.xlu0 %v467, 28
      %v849 = vpop.permute.xlu0 %848
      %850 = vrot.lane.b32.xlu0 %v479, 28
      %v851 = vpop.permute.xlu0 %850
      %852 = vrot.lane.b32.xlu0 %v491, 28
      %v853 = vpop.permute.xlu0 %852
      %854 = vrot.lane.b32.xlu0 %v503, 28
      %v855 = vpop.permute.xlu0 %854
      %856 = vrot.lane.b32.xlu0 %v515, 28
      %v857 = vpop.permute.xlu0 %856
      %858 = vrot.lane.b32.xlu0 %v527, 28
      %v859 = vpop.permute.xlu0 %858
      %860 = vrot.lane.b32.xlu0 %v539, 28
      %v861 = vpop.permute.xlu0 %860
      %862 = vrot.lane.b32.xlu0 %v551, 28
      %v863 = vpop.permute.xlu0 %862
      %864 = vrot.lane.b32.xlu0 %v716, 28
      %v865 = vpop.permute.xlu0 %864
      %866 = vrot.lane.b32.xlu0 %v835, 28
      %v867 = vpop.permute.xlu0 %866
      %v868 = vrot.slane %v788, 1
      %v869 = vrot.slane %v823, 1
      %v870 = vsel %vm584, %v868, %v869
      %871 = vrot.lane.b32.xlu0 %v593, 32
      %v872 = vpop.permute.xlu0 %871
      %873 = vrot.lane.b32.xlu0 %v596, 32
      %v874 = vpop.permute.xlu0 %873
      %875 = vrot.lane.b32.xlu0 %v599, 32
      %v876 = vpop.permute.xlu0 %875
      %877 = vrot.lane.b32.xlu0 %v602, 32
      %v878 = vpop.permute.xlu0 %877
      %879 = vrot.lane.b32.xlu0 %v605, 32
      %v880 = vpop.permute.xlu0 %879
      %881 = vrot.lane.b32.xlu0 %v608, 32
      %v882 = vpop.permute.xlu0 %881
      %883 = vrot.lane.b32.xlu0 %v611, 32
      %v884 = vpop.permute.xlu0 %883
      %885 = vrot.lane.b32.xlu0 %v614, 32
      %v886 = vpop.permute.xlu0 %885
      %887 = vrot.lane.b32.xlu0 %v617, 32
      %v888 = vpop.permute.xlu0 %887
      %889 = vrot.lane.b32.xlu0 %v620, 32
      %v890 = vpop.permute.xlu0 %889
      %891 = vrot.lane.b32.xlu0 %v623, 32
      %v892 = vpop.permute.xlu0 %891
      %893 = vrot.lane.b32.xlu0 %v626, 32
      %v894 = vpop.permute.xlu0 %893
      %895 = vrot.lane.b32.xlu0 %v629, 32
      %v896 = vpop.permute.xlu0 %895
      %897 = vrot.lane.b32.xlu0 %v632, 32
      %v898 = vpop.permute.xlu0 %897
      %899 = vrot.lane.b32.xlu0 %v751, 32
      %v900 = vpop.permute.xlu0 %899
      %901 = vrot.lane.b32.xlu0 %v870, 32
      %v902 = vpop.permute.xlu0 %901
      %vm903 = vcmask 31744
      %v905 = vsel %vm903, %v295, %v553
      %v907 = vsel %vm903, %v296, %v555
      %v909 = vsel %vm903, %v297, %v557
      %v911 = vsel %vm903, %v298, %v559
      %v913 = vsel %vm903, %v299, %v561
      %v915 = vsel %vm903, %v300, %v563
      %v917 = vsel %vm903, %v301, %v565
      %v919 = vsel %vm903, %v302, %v567
      %v921 = vsel %vm903, %v303, %v569
      %v923 = vsel %vm903, %v304, %v571
      %v925 = vsel %vm903, %v305, %v573
      %v927 = vsel %vm903, %v306, %v575
      %v929 = vsel %vm903, %v307, %v577
      %v931 = vsel %vm903, %v308, %v579
      %v933 = vsel %vm903, %v309, %v581
      %v935 = vsel %vm903, %v310, %v583
      %vm936 = vcmask 64512
      %v938 = vsel %vm936, %v905, %v634
      %v940 = vsel %vm936, %v907, %v636
      %v942 = vsel %vm936, %v909, %v638
      %v944 = vsel %vm936, %v911, %v640
      %v946 = vsel %vm936, %v913, %v642
      %v948 = vsel %vm936, %v915, %v644
      %v950 = vsel %vm936, %v917, %v646
      %v952 = vsel %vm936, %v919, %v648
      %v954 = vsel %vm936, %v921, %v650
      %v956 = vsel %vm936, %v923, %v652
      %v958 = vsel %vm936, %v925, %v654
      %v960 = vsel %vm936, %v927, %v656
      %v962 = vsel %vm936, %v929, %v658
      %v964 = vsel %vm936, %v931, %v660
      %v966 = vsel %vm936, %v933, %v662
      %v968 = vsel %vm936, %v935, %v664
      %vm969 = vcmask 97280
      %v971 = vsel %vm969, %v938, %v671
      %v973 = vsel %vm969, %v940, %v673
      %v975 = vsel %vm969, %v942, %v675
      %v977 = vsel %vm969, %v944, %v677
      %v979 = vsel %vm969, %v946, %v679
      %v981 = vsel %vm969, %v948, %v681
      %v983 = vsel %vm969, %v950, %v683
      %v985 = vsel %vm969, %v952, %v685
      %v987 = vsel %vm969, %v954, %v687
      %v989 = vsel %vm969, %v956, %v689
      %v991 = vsel %vm969, %v958, %v691
      %v993 = vsel %vm969, %v960, %v693
      %v995 = vsel %vm969, %v962, %v695
      %v997 = vsel %vm969, %v964, %v697
      %v999 = vsel %vm969, %v966, %v699
      %v1001 = vsel %vm969, %v968, %v701
      %vm1002 = vcmask 130048
      %v1004 = vsel %vm1002, %v971, %v718
      %v1006 = vsel %vm1002, %v973, %v720
      %v1008 = vsel %vm1002, %v975, %v722
      %v1010 = vsel %vm1002, %v977, %v724
      %v1012 = vsel %vm1002, %v979, %v726
      %v1014 = vsel %vm1002, %v981, %v728
      %v1016 = vsel %vm1002, %v983, %v730
      %v1018 = vsel %vm1002, %v985, %v732
      %v1020 = vsel %vm1002, %v987, %v734
      %v1022 = vsel %vm1002, %v989, %v736
      %v1024 = vsel %vm1002, %v991, %v738
      %v1026 = vsel %vm1002, %v993, %v740
      %v1028 = vsel %vm1002, %v995, %v742
      %v1030 = vsel %vm1002, %v997, %v744
      %v1032 = vsel %vm1002, %v999, %v746
      %v1034 = vsel %vm1002, %v1001, %v748
      %vm1035 = vcmask 162816
      %v1037 = vsel %vm1035, %v1004, %v753
      %v1039 = vsel %vm1035, %v1006, %v755
      %v1041 = vsel %vm1035, %v1008, %v757
      %v1043 = vsel %vm1035, %v1010, %v759
      %v1045 = vsel %vm1035, %v1012, %v761
      %v1047 = vsel %vm1035, %v1014, %v763
      %v1049 = vsel %vm1035, %v1016, %v765
      %v1051 = vsel %vm1035, %v1018, %v767
      %v1053 = vsel %vm1035, %v1020, %v769
      %v1055 = vsel %vm1035, %v1022, %v771
      %v1057 = vsel %vm1035, %v1024, %v773
      %v1059 = vsel %vm1035, %v1026, %v775
      %v1061 = vsel %vm1035, %v1028, %v777
      %v1063 = vsel %vm1035, %v1030, %v779
      %v1065 = vsel %vm1035, %v1032, %v781
      %v1067 = vsel %vm1035, %v1034, %v783
      %vm1068 = vcmask 195584
      %v1070 = vsel %vm1068, %v1037, %v790
      %v1072 = vsel %vm1068, %v1039, %v792
      %v1074 = vsel %vm1068, %v1041, %v794
      %v1076 = vsel %vm1068, %v1043, %v796
      %v1078 = vsel %vm1068, %v1045, %v798
      %v1080 = vsel %vm1068, %v1047, %v800
      %v1082 = vsel %vm1068, %v1049, %v802
      %v1084 = vsel %vm1068, %v1051, %v804
      %v1086 = vsel %vm1068, %v1053, %v806
      %v1088 = vsel %vm1068, %v1055, %v808
      %v1090 = vsel %vm1068, %v1057, %v810
      %v1092 = vsel %vm1068, %v1059, %v812
      %v1094 = vsel %vm1068, %v1061, %v814
      %v1096 = vsel %vm1068, %v1063, %v816
      %v1098 = vsel %vm1068, %v1065, %v818
      %v1100 = vsel %vm1068, %v1067, %v820
      %vm1101 = vcmask 228352
      %v1103 = vsel %vm1101, %v1070, %v837
      %v1105 = vsel %vm1101, %v1072, %v839
      %v1107 = vsel %vm1101, %v1074, %v841
      %v1109 = vsel %vm1101, %v1076, %v843
      %v1111 = vsel %vm1101, %v1078, %v845
      %v1113 = vsel %vm1101, %v1080, %v847
      %v1115 = vsel %vm1101, %v1082, %v849
      %v1117 = vsel %vm1101, %v1084, %v851
      %v1119 = vsel %vm1101, %v1086, %v853
      %v1121 = vsel %vm1101, %v1088, %v855
      %v1123 = vsel %vm1101, %v1090, %v857
      %v1125 = vsel %vm1101, %v1092, %v859
      %v1127 = vsel %vm1101, %v1094, %v861
      %v1129 = vsel %vm1101, %v1096, %v863
      %v1131 = vsel %vm1101, %v1098, %v865
      %v1133 = vsel %vm1101, %v1100, %v867
      %vm1134 = vcmask 261120
      %v1136 = vsel %vm1134, %v1103, %v872
      %v1138 = vsel %vm1134, %v1105, %v874
      %v1140 = vsel %vm1134, %v1107, %v876
      %v1142 = vsel %vm1134, %v1109, %v878
      %v1144 = vsel %vm1134, %v1111, %v880
      %v1146 = vsel %vm1134, %v1113, %v882
      %v1148 = vsel %vm1134, %v1115, %v884
      %v1150 = vsel %vm1134, %v1117, %v886
      %v1152 = vsel %vm1134, %v1119, %v888
      %v1154 = vsel %vm1134, %v1121, %v890
      %v1156 = vsel %vm1134, %v1123, %v892
      %v1158 = vsel %vm1134, %v1125, %v894
      %v1160 = vsel %vm1134, %v1127, %v896
      %v1162 = vsel %vm1134, %v1129, %v898
      %v1164 = vsel %vm1134, %v1131, %v900
      %v1166 = vsel %vm1134, %v1133, %v902
      %v1167 = vld [vmem:[%s1] sm:$0xf]
      %v1168 = vld [vmem:[%s1 + $0x4] sm:$0xf]
      %v1169 = vld [vmem:[%s1 + $0x8] sm:$0xf]
      %v1170 = vld [vmem:[%s1 + $0xc] sm:$0xf]
      %v1171 = vld [vmem:[%s1 + $0x10] sm:$0x3]
      %v1177 = vunpack.c.l.b16 %v1167
      %v1178 = vunpack.c.l.b16 %v1168
      %v1179 = vunpack.c.l.b16 %v1169
      %v1180 = vunpack.c.l.b16 %v1170
      %v1181 = vunpack.c.l.b16 %v1171
      %v1182 = vpack.c.b16 %v1178, %v1177
      %v1183 = vpack.c.b16 %v1180, %v1179
      %v1184 = vpack.c.b16 %v1181, %v1181
      %vm1187 = vcmask 293888
      %v1188 = vsel %vm1187, %v1136, 0
      %v1190 = vsel %vm1187, %v1138, 0
      %v1192 = vsel %vm1187, %v1140, 0
      %v1194 = vsel %vm1187, %v1142, 0
      %v1196 = vsel %vm1187, %v1144, 0
      %v1198 = vsel %vm1187, %v1146, 0
      %v1200 = vsel %vm1187, %v1148, 0
      %v1202 = vsel %vm1187, %v1150, 0
      %v1204 = vsel %vm1187, %v1152, 0
      %v1206 = vsel %vm1187, %v1154, 0
      %v1208 = vsel %vm1187, %v1156, 0
      %v1210 = vsel %vm1187, %v1158, 0
      %v1212 = vsel %vm1187, %v1160, 0
      %v1214 = vsel %vm1187, %v1162, 0
      %v1216 = vsel %vm1187, %v1164, 0
      %v1218 = vsel %vm1187, %v1166, 0
      %vm1220 = vcmask 1041408
      %v1222 = vsel %vm1220, %v1184, 0
      %1224 = vmatprep.subr.bf16.mxu0 0
      %1225 = vmatpush1.bf16.msra.mxu0 %v1182
      %1226 = vmatprep.subr.bf16.mxu0 0
      %1227 = vmatpush1.bf16.msra.mxu0 %v1183
      %1228 = vmatprep.subr.bf16.mxu0 0
      %1229 = vmatpush1.bf16.msra.mxu0 %v1222
      %1230 = vmatprep.subr.bf16.mxu0 0
      %1231 = vmatpush1.bf16.msra.mxu0 0
      %1232 = vmatprep.subr.bf16.mxu0 0
      %1233 = vmatpush1.bf16.msra.mxu0 0
      %1234 = vmatprep.subr.bf16.mxu0 0
      %1235 = vmatpush1.bf16.msra.mxu0 0
      %1236 = vmatprep.subr.bf16.mxu0 0
      %1237 = vmatpush1.bf16.msra.mxu0 0
      %1238 = vmatprep.subr.bf16.mxu0 0
      %1239 = vmatpush1.bf16.msra.mxu0 0
      %1240 = vmatprep.subr.bf16.mxu0 0
      %1241 = vmatpush1.bf16.msra.mxu0 0
      %1242 = vmatprep.subr.bf16.mxu0 0
      %1243 = vmatpush1.bf16.msra.mxu0 0
      %1244 = vmatprep.subr.bf16.mxu0 0
      %1245 = vmatpush1.bf16.msra.mxu0 0
      %1246 = vmatprep.subr.bf16.mxu0 0
      %1247 = vmatpush1.bf16.msra.mxu0 0
      %1248 = vmatprep.subr.bf16.mxu0 0
      %1249 = vmatpush1.bf16.msra.mxu0 0
      %1250 = vmatprep.subr.bf16.mxu0 0
      %1251 = vmatpush1.bf16.msra.mxu0 0
      %1252 = vmatprep.subr.bf16.mxu0 0
      %1253 = vmatpush1.bf16.msra.mxu0 0
      %1254 = vmatprep.subr.bf16.mxu0 0
      %1255 = vmatpush1.bf16.msra.mxu0 0
      %1256 = vmatprep.mubr.bf16.mxu0 0
      %1257 = vmatmul.mubr.bf16.gmra.mrb[0].mxu0 %v1188
      %v1258 = vpop.f32.mrb[0].mxu0
      %v1259 = vadd.f32 0.0, %v1258
      %v1260 = vpop.f32.mrb[0].mxu0
      %v1261 = vpop.f32.mrb[0].mxu0
      %v1262 = vadd.f32 0.0, %v1261
      %v1263 = vpop.f32.mrb[0].mxu0
      %1264 = vmatprep.mubr.bf16.mxu0 0
      %1265 = vmatmul.mubr.bf16.gmra.mrb[0].mxu0 %v1190
      %v1266 = vpop.f32.mrb[0].mxu0
      %v1267 = vadd.f32 0.0, %v1266
      %v1268 = vpop.f32.mrb[0].mxu0
      %v1269 = vpop.f32.mrb[0].mxu0
      %v1270 = vadd.f32 0.0, %v1269
      %v1271 = vpop.f32.mrb[0].mxu0
      %1272 = vmatprep.mubr.bf16.mxu0 0
      %1273 = vmatmul.mubr.bf16.gmra.mrb[0].mxu0 %v1192
      %v1274 = vpop.f32.mrb[0].mxu0
      %v1275 = vadd.f32 0.0, %v1274
      %v1276 = vpop.f32.mrb[0].mxu0
      %v1277 = vpop.f32.mrb[0].mxu0
      %v1278 = vadd.f32 0.0, %v1277
      %v1279 = vpop.f32.mrb[0].mxu0
      %1280 = vmatprep.mubr.bf16.mxu0 0
      %1281 = vmatmul.mubr.bf16.gmra.mrb[0].mxu0 %v1194
      %v1282 = vpop.f32.mrb[0].mxu0
      %v1283 = vadd.f32 0.0, %v1282
      %v1284 = vpop.f32.mrb[0].mxu0
      %v1285 = vpop.f32.mrb[0].mxu0
      %v1286 = vadd.f32 0.0, %v1285
      %v1287 = vpop.f32.mrb[0].mxu0
      %1288 = vmatprep.mubr.bf16.mxu0 0
      %1289 = vmatmul.mubr.bf16.gmra.mrb[0].mxu0 %v1196
      %v1290 = vpop.f32.mrb[0].mxu0
      %v1291 = vadd.f32 0.0, %v1290
      %v1292 = vpop.f32.mrb[0].mxu0
      %v1293 = vpop.f32.mrb[0].mxu0
      %v1294 = vadd.f32 0.0, %v1293
      %v1295 = vpop.f32.mrb[0].mxu0
      %1296 = vmatprep.mubr.bf16.mxu0 0
      %1297 = vmatmul.mubr.bf16.gmra.mrb[0].mxu0 %v1198
      %v1298 = vpop.f32.mrb[0].mxu0
      %v1299 = vadd.f32 0.0, %v1298
      %v1300 = vpop.f32.mrb[0].mxu0
      %v1301 = vpop.f32.mrb[0].mxu0
      %v1302 = vadd.f32 0.0, %v1301
      %v1303 = vpop.f32.mrb[0].mxu0
      %1304 = vmatprep.mubr.bf16.mxu0 0
      %1305 = vmatmul.mubr.bf16.gmra.mrb[0].mxu0 %v1200
      %v1306 = vpop.f32.mrb[0].mxu0
      %v1307 = vadd.f32 0.0, %v1306
      %v1308 = vpop.f32.mrb[0].mxu0
      %v1309 = vpop.f32.mrb[0].mxu0
      %v1310 = vadd.f32 0.0, %v1309
      %v1311 = vpop.f32.mrb[0].mxu0
      %1312 = vmatprep.mubr.bf16.mxu0 0
      %1313 = vmatmul.mubr.bf16.gmra.mrb[0].mxu0 %v1202
      %v1314 = vpop.f32.mrb[0].mxu0
      %v1315 = vadd.f32 0.0, %v1314
      %v1316 = vpop.f32.mrb[0].mxu0
      %v1317 = vpop.f32.mrb[0].mxu0
      %v1318 = vadd.f32 0.0, %v1317
      %v1319 = vpop.f32.mrb[0].mxu0
      %1320 = vmatprep.mubr.bf16.mxu0 0
      %1321 = vmatmul.mubr.bf16.gmra.mrb[0].mxu0 %v1204
      %v1322 = vpop.f32.mrb[0].mxu0
      %v1323 = vadd.f32 0.0, %v1322
      %v1324 = vpop.f32.mrb[0].mxu0
      %v1325 = vpop.f32.mrb[0].mxu0
      %v1326 = vadd.f32 0.0, %v1325
      %v1327 = vpop.f32.mrb[0].mxu0
      %1328 = vmatprep.mubr.bf16.mxu0 0
      %1329 = vmatmul.mubr.bf16.gmra.mrb[0].mxu0 %v1206
      %v1330 = vpop.f32.mrb[0].mxu0
      %v1331 = vadd.f32 0.0, %v1330
      %v1332 = vpop.f32.mrb[0].mxu0
      %v1333 = vpop.f32.mrb[0].mxu0
      %v1334 = vadd.f32 0.0, %v1333
      %v1335 = vpop.f32.mrb[0].mxu0
      %1336 = vmatprep.mubr.bf16.mxu0 0
      %1337 = vmatmul.mubr.bf16.gmra.mrb[0].mxu0 %v1208
      %v1338 = vpop.f32.mrb[0].mxu0
      %v1339 = vadd.f32 0.0, %v1338
      %v1340 = vpop.f32.mrb[0].mxu0
      %v1341 = vpop.f32.mrb[0].mxu0
      %v1342 = vadd.f32 0.0, %v1341
      %v1343 = vpop.f32.mrb[0].mxu0
      %1344 = vmatprep.mubr.bf16.mxu0 0
      %1345 = vmatmul.mubr.bf16.gmra.mrb[0].mxu0 %v1210
      %v1346 = vpop.f32.mrb[0].mxu0
      %v1347 = vadd.f32 0.0, %v1346
      %v1348 = vpop.f32.mrb[0].mxu0
      %v1349 = vpop.f32.mrb[0].mxu0
      %v1350 = vadd.f32 0.0, %v1349
      %v1351 = vpop.f32.mrb[0].mxu0
      %1352 = vmatprep.mubr.bf16.mxu0 0
      %1353 = vmatmul.mubr.bf16.gmra.mrb[0].mxu0 %v1212
      %v1354 = vpop.f32.mrb[0].mxu0
      %v1355 = vadd.f32 0.0, %v1354
      %v1356 = vpop.f32.mrb[0].mxu0
      %v1357 = vpop.f32.mrb[0].mxu0
      %v1358 = vadd.f32 0.0, %v1357
      %v1359 = vpop.f32.mrb[0].mxu0
      %1360 = vmatprep.mubr.bf16.mxu0 0
      %1361 = vmatmul.mubr.bf16.gmra.mrb[0].mxu0 %v1214
      %v1362 = vpop.f32.mrb[0].mxu0
      %v1363 = vadd.f32 0.0, %v1362
      %v1364 = vpop.f32.mrb[0].mxu0
      %v1365 = vpop.f32.mrb[0].mxu0
      %v1366 = vadd.f32 0.0, %v1365
      %v1367 = vpop.f32.mrb[0].mxu0
      %1368 = vmatprep.mubr.bf16.mxu0 0
      %1369 = vmatmul.mubr.bf16.gmra.mrb[0].mxu0 %v1216
      %v1370 = vpop.f32.mrb[0].mxu0
      %v1371 = vadd.f32 0.0, %v1370
      %v1372 = vpop.f32.mrb[0].mxu0
      %v1373 = vpop.f32.mrb[0].mxu0
      %v1374 = vadd.f32 0.0, %v1373
      %v1375 = vpop.f32.mrb[0].mxu0
      %1376 = vmatprep.mubr.bf16.mxu0 0
      %1377 = vmatmul.mubr.bf16.gmra.mrb[0].mxu0 %v1218
      %v1378 = vpop.f32.mrb[0].mxu0
      %v1379 = vadd.f32 0.0, %v1378
      %v1380 = vpop.f32.mrb[0].mxu0
      %v1381 = vpop.f32.mrb[0].mxu0
      %v1382 = vadd.f32 0.0, %v1381
      %v1383 = vpop.f32.mrb[0].mxu0
      %1384 = vdwg.mxu0
      %v1385 = vadd.f32 %v1259, %v1262
      %v1386 = vadd.f32 %v1385, %v1267
      %v1387 = vadd.f32 %v1386, %v1270
      %v1388 = vadd.f32 %v1387, %v1275
      %v1389 = vadd.f32 %v1388, %v1278
      %v1390 = vadd.f32 %v1389, %v1283
      %v1391 = vadd.f32 %v1390, %v1286
      %v1392 = vadd.f32 %v1391, %v1291
      %v1393 = vadd.f32 %v1392, %v1294
      %v1394 = vadd.f32 %v1393, %v1299
      %v1395 = vadd.f32 %v1394, %v1302
      %v1396 = vadd.f32 %v1395, %v1307
      %v1397 = vadd.f32 %v1396, %v1310
      %v1398 = vadd.f32 %v1397, %v1315
      %v1399 = vadd.f32 %v1398, %v1318
      %v1400 = vadd.f32 %v1399, %v1323
      %v1401 = vadd.f32 %v1400, %v1326
      %v1402 = vadd.f32 %v1401, %v1331
      %v1403 = vadd.f32 %v1402, %v1334
      %v1404 = vadd.f32 %v1403, %v1339
      %v1405 = vadd.f32 %v1404, %v1342
      %v1406 = vadd.f32 %v1405, %v1347
      %v1407 = vadd.f32 %v1406, %v1350
      %v1408 = vadd.f32 %v1407, %v1355
      %v1409 = vadd.f32 %v1408, %v1358
      %v1410 = vadd.f32 %v1409, %v1363
      %v1411 = vadd.f32 %v1410, %v1366
      %v1412 = vadd.f32 %v1411, %v1371
      %v1413 = vadd.f32 %v1412, %v1374
      %v1414 = vadd.f32 %v1413, %v1379
      %v1415 = vadd.f32 %v1414, %v1382
      %v1416 = vrot.slane %v1415, 4
      %v1417 = vadd.f32 %v1415, %v1416
      %v1418 = vrot.slane %v1417, 2
      %v1419 = vadd.f32 %v1417, %v1418
      %v1420 = vrot.slane %v1419, 1
      %v1421 = vadd.f32 %v1419, %v1420
      %1422 = vst [vmem:[%s175] sm:$0x1] %v1421
      %v1423 = vmul.f32 %v1259, %v1259
      %v1424 = vmul.f32 %v1262, %v1262
      %v1425 = vmul.f32 %v1267, %v1267
      %v1426 = vmul.f32 %v1270, %v1270
      %v1427 = vmul.f32 %v1275, %v1275
      %v1428 = vmul.f32 %v1278, %v1278
      %v1429 = vmul.f32 %v1283, %v1283
      %v1430 = vmul.f32 %v1286, %v1286
      %v1431 = vmul.f32 %v1291, %v1291
      %v1432 = vmul.f32 %v1294, %v1294
      %v1433 = vmul.f32 %v1299, %v1299
      %v1434 = vmul.f32 %v1302, %v1302
      %v1435 = vmul.f32 %v1307, %v1307
      %v1436 = vmul.f32 %v1310, %v1310
      %v1437 = vmul.f32 %v1315, %v1315
      %v1438 = vmul.f32 %v1318, %v1318
      %v1439 = vmul.f32 %v1323, %v1323
      %v1440 = vmul.f32 %v1326, %v1326
      %v1441 = vmul.f32 %v1331, %v1331
      %v1442 = vmul.f32 %v1334, %v1334
      %v1443 = vmul.f32 %v1339, %v1339
      %v1444 = vmul.f32 %v1342, %v1342
      %v1445 = vmul.f32 %v1347, %v1347
      %v1446 = vmul.f32 %v1350, %v1350
      %v1447 = vmul.f32 %v1355, %v1355
      %v1448 = vmul.f32 %v1358, %v1358
      %v1449 = vmul.f32 %v1363, %v1363
      %v1450 = vmul.f32 %v1366, %v1366
      %v1451 = vmul.f32 %v1371, %v1371
      %v1452 = vmul.f32 %v1374, %v1374
      %v1453 = vmul.f32 %v1379, %v1379
      %v1454 = vmul.f32 %v1382, %v1382
      %v1455 = vadd.f32 %v1423, %v1424
      %v1456 = vadd.f32 %v1455, %v1425
      %v1457 = vadd.f32 %v1456, %v1426
      %v1458 = vadd.f32 %v1457, %v1427
      %v1459 = vadd.f32 %v1458, %v1428
      %v1460 = vadd.f32 %v1459, %v1429
      %v1461 = vadd.f32 %v1460, %v1430
      %v1462 = vadd.f32 %v1461, %v1431
      %v1463 = vadd.f32 %v1462, %v1432
      %v1464 = vadd.f32 %v1463, %v1433
      %v1465 = vadd.f32 %v1464, %v1434
      %v1466 = vadd.f32 %v1465, %v1435
      %v1467 = vadd.f32 %v1466, %v1436
      %v1468 = vadd.f32 %v1467, %v1437
      %v1469 = vadd.f32 %v1468, %v1438
      %v1470 = vadd.f32 %v1469, %v1439
      %v1471 = vadd.f32 %v1470, %v1440
      %v1472 = vadd.f32 %v1471, %v1441
      %v1473 = vadd.f32 %v1472, %v1442
      %v1474 = vadd.f32 %v1473, %v1443
      %v1475 = vadd.f32 %v1474, %v1444
      %v1476 = vadd.f32 %v1475, %v1445
      %v1477 = vadd.f32 %v1476, %v1446
      %v1478 = vadd.f32 %v1477, %v1447
      %v1479 = vadd.f32 %v1478, %v1448
      %v1480 = vadd.f32 %v1479, %v1449
      %v1481 = vadd.f32 %v1480, %v1450
      %v1482 = vadd.f32 %v1481, %v1451
      %v1483 = vadd.f32 %v1482, %v1452
      %v1484 = vadd.f32 %v1483, %v1453
      %v1485 = vadd.f32 %v1484, %v1454
      %v1486 = vrot.slane %v1485, 4
      %v1487 = vadd.f32 %v1485, %v1486
      %v1488 = vrot.slane %v1487, 2
      %v1489 = vadd.f32 %v1487, %v1488
      %v1490 = vrot.slane %v1489, 1
      %v1491 = vadd.f32 %v1489, %v1490
      %1492 = vst [vmem:[%s175 + $0x1] sm:$0x1] %v1491
      %p1493 = scmp.lt.s32.totalorder %s17, 1
      %s1494 = scalar_select %p1493, %s17, 1
      %p1495 = scmp.lt.s32.totalorder %s18, 0
      %s1496 = scalar_select %p1495, %s18, 0
      %s1497 = sadd.s32 %s1496, %s1494
      %s1498 = smul.addr %s1497, 2
      %s1499 = scalar_lea.vmem %s2, %s1498
      // Predicated region
      $region29: #{conv_bn.2} parent=27 // pred_check
        %p1500 = pneg %p94
      $region30: #{conv_bn.2} parent=27 // pred_check_branch
        %1502 = sbr.rel (%p1500) target = $region32
      $region31: #{conv_bn.2} parent=27 // pred_region
        _
      $region32: #{conv_bn.2} parent=27 // pred_fallthru
        _
    $region28: #{conv_bn.2} parent=5 // pred_fallthru
      _
    %p1503 = scmp.le.s32.totalorder 2, %s8
    // Predicated region
    $region33: #{conv_bn.2} parent=5 // pred_check
      %p1504 = pneg %p1503
    $region34: #{conv_bn.2} parent=5 // pred_check_branch
      %1506 = sbr.rel (%p1504) target = $region36
    $region35: #{conv_bn.2} parent=5 // pred_region
      %s1507 = ssub.s32 %s8, 2
      // Predicated region
      $region37: #{conv_bn.2} parent=35 // pred_check
        %p1508 = pneg %p100
      $region38: #{conv_bn.2} parent=35 // pred_check_branch
        %1510 = sbr.rel (%p1508) target = $region40
      $region39: #{conv_bn.2} parent=35 // pred_region
        %p1511 = scmp.lt.s32.totalorder %s19, 1
        %s1512 = scalar_select %p1511, %s19, 1
        %p1513 = scmp.lt.s32.totalorder %s20, 0
        %s1514 = scalar_select %p1513, %s20, 0
        %s1515 = sadd.s32 %s1514, %s1512
        %s1516 = smul.addr %s1515, 2
        %s1517 = scalar_lea.vmem %s2, %s1516
      $region40: #{conv_bn.2} parent=35 // pred_fallthru
        _
    $region36: #{conv_bn.2} parent=5 // pred_fallthru
      _
  $region6: #{conv_bn.2} parent=0 // loop_footer
    %s12 = sadd.s32 1, %s8
  $region7: #{conv_bn.2} parent=0 // loop_footer_branch
    %7 = sbr.rel target = $region3
  $region8: #{conv_bn.2} parent=0 // loop_exit
    _

// kernel: conv_bn.3
$region0: #{conv_bn.3}
  #allocation0 [shape = 'u32[]', space=smem, size = 0x4, offset = 0x4, fixed_abs, tag = 'smem constant byte address 0x4 - core index']
  #allocation1 [shape = 'u32[144,128]{1,0:T(1,128)}', space=vmem, size = 0x12000, scoped, tag = 'internal scratch']
  %s0 = inlined_call_operand.vmem [shape: bf16[2,1,18,18,4], index: 0, kind: input, shape index: {}]
  %s1 = inlined_call_operand.vmem [shape: bf16[36,128], index: 1, kind: input, shape index: {}]
  %s2 = inlined_call_operand.vmem [shape: f32[1,128], index: 2, kind: input, shape index: {}]
  %s3 = inlined_call_operand.vmem [shape: f32[1,128], index: 3, kind: input, shape index: {}]
  %s4 = inlined_call_operand.vmem [shape: f32[2,16,16,128], index: 4, kind: output, shape index: {}]
  %s5 = sld [smem:[#allocation0]]
  $region49: #{conv_bn.3} parent=0
    _
  %s7 = ssub.s32 1, %s5
  %s8 = scalar_select 0, %s7, %s5
  loop: start=0, step=1, limit=4
  $region2: #{conv_bn.3} parent=0 // loop_pre_header
    _
  $region3: #{conv_bn.3} parent=0 // loop_header
    %s10 = sphi 0, %s14
    %p11 = scmp.ge.s32.totalorder %s10, 4
    %s17 = sphi 0, %s29
    %s18 = sphi 0, %s25
    %s19 = sphi 0, %s17
    %s20 = sphi 0, %s18
    %s21 = sphi 0, %s19
    %s22 = sphi 0, %s20
    %s34 = sphi 0, %s36
    %s37 = sphi 0, %s34
    %s38 = sphi 0, %s37
    %s54 = sphi 0, %s38
    %s58 = sphi 0, %s58
    %s60 = sphi 0, %s58
    %s61 = sphi 0, %s60
    %s75 = sphi 0, %s61
    %s79 = sphi 0, %s79
    %s81 = sphi 0, %s79
    %s82 = sphi 0, %s81
    %s96 = sphi 0, %s82
    %s100 = sphi 0, %s100
    %s102 = sphi 0, %s100
    %s103 = sphi 0, %s102
    %s117 = sphi 0, %s103
    %s125 = sphi 0, %s127
    %s128 = sphi 0, %s125
    %s129 = sphi 0, %s128
    %s145 = sphi 0, %s129
  $region4: #{conv_bn.3} parent=0 // loop_header_branch
    %13 = sbr.rel (%p11) target = $region8
  $region5: #{conv_bn.3} parent=0 // loop_body
    %s15 = ssub.s32 %s10, 1
    %s16 = ssub.s32 %s10, 2
    %s23 = sadd.s32 1, %s18
    %p24 = scmp.ge.s32.totalorder %s23, 1
    %s25 = scalar_select %p24, 0, %s23
    %s26 = sadd.s32 1, %s17
    %s27 = scalar_select %p24, %s26, %s17
    %p28 = scmp.ge.s32.totalorder %s27, 2
    %s29 = scalar_select %p28, 0, %s27
    %s30 = ssub.s32 %s17, %s29
    %s31 = ssub.s32 %s18, %s25
    %s32 = sor.u32 %s30, %s31
    %p33 = scmp.eq.s32.totalorder %s32, 0
    %s35 = sadd.s32 %s34, 1
    %s36 = scalar_select %p33, %s34, %s35
    %p39 = pneg %p33
    %p40 = scmp.eq.s32.totalorder %s10, 1
    %p41 = por %p39, %p40
    %p42 = scmp.ne.s32.totalorder %s34, %s37
    %p43 = scmp.eq.s32.totalorder %s10, 0
    %p44 = por %p42, %p43
    %p45 = scmp.ne.s32.totalorder %s34, %s37
    %p46 = scmp.eq.s32.totalorder %s15, 1
    %p47 = por %p45, %p46
    %p48 = scmp.ne.s32.totalorder %s37, %s38
    %p49 = scmp.eq.s32.totalorder %s15, 0
    %p50 = por %p48, %p49
    %p51 = scmp.ne.s32.totalorder %s37, %s38
    %p52 = scmp.eq.s32.totalorder %s16, 1
    %p53 = por %p51, %p52
    %p55 = scmp.ne.s32.totalorder %s38, %s54
    %p56 = scmp.eq.s32.totalorder %s16, 0
    %p57 = por %p55, %p56
    %s59 = sadd.s32 %s58, 1
    %p62 = scmp.eq.s32.totalorder %s10, 1
    %p63 = scmp.ne.s32.totalorder %s58, %s60
    %p64 = scmp.eq.s32.totalorder %s10, 0
    %p65 = por %p63, %p64
    %p66 = scmp.ne.s32.totalorder %s58, %s60
    %p67 = scmp.eq.s32.totalorder %s15, 1
    %p68 = por %p66, %p67
    %p69 = scmp.ne.s32.totalorder %s60, %s61
    %p70 = scmp.eq.s32.totalorder %s15, 0
    %p71 = por %p69, %p70
    %p72 = scmp.ne.s32.totalorder %s60, %s61
    %p73 = scmp.eq.s32.totalorder %s16, 1
    %p74 = por %p72, %p73
    %p76 = scmp.ne.s32.totalorder %s61, %s75
    %p77 = scmp.eq.s32.totalorder %s16, 0
    %p78 = por %p76, %p77
    %s80 = sadd.s32 %s79, 1
    %p83 = scmp.eq.s32.totalorder %s10, 1
    %p84 = scmp.ne.s32.totalorder %s79, %s81
    %p85 = scmp.eq.s32.totalorder %s10, 0
    %p86 = por %p84, %p85
    %p87 = scmp.ne.s32.totalorder %s79, %s81
    %p88 = scmp.eq.s32.totalorder %s15, 1
    %p89 = por %p87, %p88
    %p90 = scmp.ne.s32.totalorder %s81, %s82
    %p91 = scmp.eq.s32.totalorder %s15, 0
    %p92 = por %p90, %p91
    %p93 = scmp.ne.s32.totalorder %s81, %s82
    %p94 = scmp.eq.s32.totalorder %s16, 1
    %p95 = por %p93, %p94
    %p97 = scmp.ne.s32.totalorder %s82, %s96
    %p98 = scmp.eq.s32.totalorder %s16, 0
    %p99 = por %p97, %p98
    %s101 = sadd.s32 %s100, 1
    %p104 = scmp.eq.s32.totalorder %s10, 1
    %p105 = scmp.ne.s32.totalorder %s100, %s102
    %p106 = scmp.eq.s32.totalorder %s10, 0
    %p107 = por %p105, %p106
    %p108 = scmp.ne.s32.totalorder %s100, %s102
    %p109 = scmp.eq.s32.totalorder %s15, 1
    %p110 = por %p108, %p109
    %p111 = scmp.ne.s32.totalorder %s102, %s103
    %p112 = scmp.eq.s32.totalorder %s15, 0
    %p113 = por %p111, %p112
    %p114 = scmp.ne.s32.totalorder %s102, %s103
    %p115 = scmp.eq.s32.totalorder %s16, 1
    %p116 = por %p114, %p115
    %p118 = scmp.ne.s32.totalorder %s103, %s117
    %p119 = scmp.eq.s32.totalorder %s16, 0
    %p120 = por %p118, %p119
    %s121 = ssub.s32 %s17, %s29
    %s122 = ssub.s32 %s18, %s25
    %s123 = sor.u32 %s121, %s122
    %p124 = scmp.eq.s32.totalorder %s123, 0
    %s126 = sadd.s32 %s125, 1
    %s127 = scalar_select %p124, %s125, %s126
    %p130 = pneg %p124
    %p131 = scmp.eq.s32.totalorder %s10, 1
    %p132 = por %p130, %p131
    %p133 = scmp.ne.s32.totalorder %s125, %s128
    %p134 = scmp.eq.s32.totalorder %s10, 0
    %p135 = por %p133, %p134
    %p136 = scmp.ne.s32.totalorder %s125, %s128
    %p137 = scmp.eq.s32.totalorder %s15, 1
    %p138 = por %p136, %p137
    %p139 = scmp.ne.s32.totalorder %s128, %s129
    %p140 = scmp.eq.s32.totalorder %s15, 0
    %p141 = por %p139, %p140
    %p142 = scmp.ne.s32.totalorder %s128, %s129
    %p143 = scmp.eq.s32.totalorder %s16, 1
    %p144 = por %p142, %p143
    %p146 = scmp.ne.s32.totalorder %s129, %s145
    %p147 = scmp.eq.s32.totalorder %s16, 0
    %p148 = por %p146, %p147
    %p149 = scmp.le.s32.totalorder 1, %s10
    %p150 = scmp.lt.s32.totalorder %s10, 3
    %p151 = pnand %p149, %p150
    %p152 = pneg %p151
    // Predicated region
    $region9: #{conv_bn.3} parent=5 // pred_check
      _
    $region10: #{conv_bn.3} parent=5 // pred_check_branch
      %154 = sbr.rel (%p151) target = $region12
    $region11: #{conv_bn.3} parent=5 // pred_region
      %s155 = ssub.s32 %s10, 1
      // Predicated region
      $region13: #{conv_bn.3} parent=11 // pred_check
        %p156 = pneg %p71
      $region14: #{conv_bn.3} parent=11 // pred_check_branch
        %158 = sbr.rel (%p156) target = $region16
      $region15: #{conv_bn.3} parent=11 // pred_region
        _
      $region16: #{conv_bn.3} parent=11 // pred_fallthru
        _
      // Predicated region
      $region17: #{conv_bn.3} parent=11 // pred_check
        %p159 = pneg %p92
      $region18: #{conv_bn.3} parent=11 // pred_check_branch
        %161 = sbr.rel (%p159) target = $region20
      $region19: #{conv_bn.3} parent=11 // pred_region
        _
      $region20: #{conv_bn.3} parent=11 // pred_fallthru
        _
      // Predicated region
      $region21: #{conv_bn.3} parent=11 // pred_check
        %p162 = pneg %p113
      $region22: #{conv_bn.3} parent=11 // pred_check_branch
        %164 = sbr.rel (%p162) target = $region24
      $region23: #{conv_bn.3} parent=11 // pred_region
        _
      $region24: #{conv_bn.3} parent=11 // pred_fallthru
        _
    $region12: #{conv_bn.3} parent=5 // pred_fallthru
      _
    %p165 = scmp.lt.s32.totalorder %s10, 2
    // Predicated region
    $region25: #{conv_bn.3} parent=5 // pred_check
      %p166 = pneg %p165
    $region26: #{conv_bn.3} parent=5 // pred_check_branch
      %168 = sbr.rel (%p166) target = $region28
    $region27: #{conv_bn.3} parent=5 // pred_region
      // Predicated region
      $region29: #{conv_bn.3} parent=27 // pred_check
        %p169 = pneg %p44
      $region30: #{conv_bn.3} parent=27 // pred_check_branch
        %171 = sbr.rel (%p169) target = $region32
      $region31: #{conv_bn.3} parent=27 // pred_region
        %p172 = scmp.lt.s32.totalorder %s17, 1
        %s173 = scalar_select %p172, %s17, 1
        %p174 = scmp.lt.s32.totalorder %s18, 0
        %s175 = scalar_select %p174, %s18, 0
        %s176 = smul.addr %s175, 54
        %s177 = smul.addr %s173, 54
        %s178 = sadd.s32 %s176, %s177
        %s179 = smul.addr %s178, 4
        %s180 = scalar_lea.vmem %s0, %s179
      $region32: #{conv_bn.3} parent=27 // pred_fallthru
        _
    $region28: #{conv_bn.3} parent=5 // pred_fallthru
      _
    %p181 = scmp.le.s32.totalorder 1, %s10
    %p182 = scmp.lt.s32.totalorder %s10, 3
    %p183 = pnand %p181, %p182
    %p184 = pneg %p183
    // Predicated region
    $region33: #{conv_bn.3} parent=5 // pred_check
      _
    $region34: #{conv_bn.3} parent=5 // pred_check_branch
      %186 = sbr.rel (%p183) target = $region36
    $region35: #{conv_bn.3} parent=5 // pred_region
      %s187 = ssub.s32 %s10, 1
      %p188 = scmp.lt.s32.totalorder %s19, 1
      %s189 = scalar_select %p188, %s19, 1
      %p190 = scmp.lt.s32.totalorder %s20, 0
      %s191 = scalar_select %p190, %s20, 0
      %s192 = smul.addr %s191, 54
      %s193 = smul.addr %s189, 54
      %s194 = sadd.s32 %s192, %s193
      %s195 = smul.addr %s194, 4
      %s196 = scalar_lea.vmem %s0, %s195
      %p197 = pneg %p50
      %p198 = pneg %p47
      %p199 = pneg %p71
      %p200 = pneg %p68
      %p201 = pneg %p92
      %p202 = pneg %p89
      %p203 = pneg %p113
      %p204 = pneg %p110
      %p205 = pneg %p141
      %p206 = pneg %p138
      %s207 = smul.u32 16, %s20
      %p208 = scmp.lt.s32.totalorder %s19, 1
      %s209 = scalar_select %p208, %s19, 1
      %p210 = scmp.lt.s32.totalorder %s207, 15
      %s211 = scalar_select %p210, %s207, 15
      %s212 = smul.addr %s211, 2
      %s213 = smul.addr %s209, 32
      %s214 = sadd.s32 %s212, %s213
      %s215 = smul.addr %s214, 8
      %s216 = scalar_lea.vmem %s4, %s215
      %p217 = scmp.lt.s32.totalorder %s19, 1
      %s218 = scalar_select %p217, %s19, 1
      %p219 = scmp.lt.s32.totalorder %s20, 0
      %s220 = scalar_select %p219, %s20, 0
      %s221 = smul.addr %s220, 54
      %s222 = smul.addr %s218, 54
      %s223 = sadd.s32 %s221, %s222
      %s224 = smul.addr %s223, 4
      %s225 = scalar_lea.vmem %s0, %s224
      %s226 = smul.u32 16, %s20
      %p227 = scmp.lt.s32.totalorder %s19, 1
      %s228 = scalar_select %p227, %s19, 1
      %p229 = scmp.lt.s32.totalorder %s226, 15
      %s230 = scalar_select %p229, %s226, 15
      %s231 = smul.addr %s230, 2
      %s232 = smul.addr %s228, 32
      %s233 = sadd.s32 %s231, %s232
      %s234 = smul.addr %s233, 8
      %s235 = scalar_lea.vmem %s4, %s234
      %s236 = smul.u32 16, %s20
      %v238 = vld [vmem:[%s225] sm:$0xf]
      %v239 = vld [vmem:[%s225 + $0x4] sm:$0xf]
      %v240 = vld [vmem:[%s225 + $0x8] sm:$0x1]
      %v241 = vld [vmem:[%s225 + $0xc] sm:$0xf]
      %v242 = vld [vmem:[%s225 + $0x10] sm:$0xf]
      %v243 = vld [vmem:[%s225 + $0x14] sm:$0x1]
      %v244 = vld [vmem:[%s225 + $0x18] sm:$0xf]
      %v245 = vld [vmem:[%s225 + $0x1c] sm:$0xf]
      %v246 = vld [vmem:[%s225 + $0x20] sm:$0x1]
      %v247 = vld [vmem:[%s225 + $0x24] sm:$0xf]
      %v248 = vld [vmem:[%s225 + $0x28] sm:$0xf]
      %v249 = vld [vmem:[%s225 + $0x2c] sm:$0x1]
      %v250 = vld [vmem:[%s225 + $0x30] sm:$0xf]
      %v251 = vld [vmem:[%s225 + $0x34] sm:$0xf]
      %v252 = vld [vmem:[%s225 + $0x38] sm:$0x1]
      %v253 = vld [vmem:[%s225 + $0x3c] sm:$0xf]
      %v254 = vld [vmem:[%s225 + $0x40] sm:$0xf]
      %v255 = vld [vmem:[%s225 + $0x44] sm:$0x1]
      %v256 = vld [vmem:[%s225 + $0x48] sm:$0xf]
      %v257 = vld [vmem:[%s225 + $0x4c] sm:$0xf]
      %v258 = vld [vmem:[%s225 + $0x50] sm:$0x1]
      %v259 = vld [vmem:[%s225 + $0x54] sm:$0xf]
      %v260 = vld [vmem:[%s225 + $0x58] sm:$0xf]
      %v261 = vld [vmem:[%s225 + $0x5c] sm:$0x1]
      %v262 = vld [vmem:[%s225 + $0x60] sm:$0xf]
      %v263 = vld [vmem:[%s225 + $0x64] sm:$0xf]
      %v264 = vld [vmem:[%s225 + $0x68] sm:$0x1]
      %v265 = vld [vmem:[%s225 + $0x6c] sm:$0xf]
      %v266 = vld [vmem:[%s225 + $0x70] sm:$0xf]
      %v267 = vld [vmem:[%s225 + $0x74] sm:$0x1]
      %v268 = vld [vmem:[%s225 + $0x78] sm:$0xf]
      %v269 = vld [vmem:[%s225 + $0x7c] sm:$0xf]
      %v270 = vld [vmem:[%s225 + $0x80] sm:$0x1]
      %v271 = vld [vmem:[%s225 + $0x84] sm:$0xf]
      %v272 = vld [vmem:[%s225 + $0x88] sm:$0xf]
      %v273 = vld [vmem:[%s225 + $0x8c] sm:$0x1]
      %v274 = vld [vmem:[%s225 + $0x90] sm:$0xf]
      %v275 = vld [vmem:[%s225 + $0x94] sm:$0xf]
      %v276 = vld [vmem:[%s225 + $0x98] sm:$0x1]
      %v277 = vld [vmem:[%s225 + $0x9c] sm:$0xf]
      %v278 = vld [vmem:[%s225 + $0xa0] sm:$0xf]
      %v279 = vld [vmem:[%s225 + $0xa4] sm:$0x1]
      %v280 = vld [vmem:[%s225 + $0xa8] sm:$0xf]
      %v281 = vld [vmem:[%s225 + $0xac] sm:$0xf]
      %v282 = vld [vmem:[%s225 + $0xb0] sm:$0x1]
      %v283 = vld [vmem:[%s225 + $0xb4] sm:$0xf]
      %v284 = vld [vmem:[%s225 + $0xb8] sm:$0xf]
      %v285 = vld [vmem:[%s225 + $0xbc] sm:$0x1]
      %v286 = vld [vmem:[%s225 + $0xc0] sm:$0xf]
      %v287 = vld [vmem:[%s225 + $0xc4] sm:$0xf]
      %v288 = vld [vmem:[%s225 + $0xc8] sm:$0x1]
      %v289 = vld [vmem:[%s225 + $0xcc] sm:$0xf]
      %v290 = vld [vmem:[%s225 + $0xd0] sm:$0xf]
      %v291 = vld [vmem:[%s225 + $0xd4] sm:$0x1]
      %v324 = vunpack.c.l.b16 %v238
      %v325 = vunpack.c.l.b16 %v239
      %v326 = vunpack.c.l.b16 %v241
      %v327 = vunpack.c.l.b16 %v242
      %v328 = vunpack.c.l.b16 %v244
      %v329 = vunpack.c.l.b16 %v245
      %v330 = vunpack.c.l.b16 %v247
      %v331 = vunpack.c.l.b16 %v248
      %v332 = vunpack.c.l.b16 %v250
      %v333 = vunpack.c.l.b16 %v251
      %v334 = vunpack.c.l.b16 %v253
      %v335 = vunpack.c.l.b16 %v254
      %v336 = vunpack.c.l.b16 %v256
      %v337 = vunpack.c.l.b16 %v257
      %v338 = vunpack.c.l.b16 %v259
      %v339 = vunpack.c.l.b16 %v260
      %v340 = vunpack.c.l.b16 %v262
      %v341 = vunpack.c.l.b16 %v263
      %v342 = vunpack.c.l.b16 %v265
      %v343 = vunpack.c.l.b16 %v266
      %v344 = vunpack.c.l.b16 %v268
      %v345 = vunpack.c.l.b16 %v269
      %v346 = vunpack.c.l.b16 %v271
      %v347 = vunpack.c.l.b16 %v272
      %v348 = vunpack.c.l.b16 %v274
      %v349 = vunpack.c.l.b16 %v275
      %v350 = vunpack.c.l.b16 %v277
      %v351 = vunpack.c.l.b16 %v278
      %v352 = vunpack.c.l.b16 %v280
      %v353 = vunpack.c.l.b16 %v281
      %v354 = vunpack.c.l.b16 %v283
      %v355 = vunpack.c.l.b16 %v284
      %v356 = vpack.c.b16 %v325, %v324
      %v357 = vpack.c.b16 %v327, %v326
      %v358 = vpack.c.b16 %v329, %v328
      %v359 = vpack.c.b16 %v331, %v330
      %v360 = vpack.c.b16 %v333, %v332
      %v361 = vpack.c.b16 %v335, %v334
      %v362 = vpack.c.b16 %v337, %v336
      %v363 = vpack.c.b16 %v339, %v338
      %v364 = vpack.c.b16 %v341, %v340
      %v365 = vpack.c.b16 %v343, %v342
      %v366 = vpack.c.b16 %v345, %v344
      %v367 = vpack.c.b16 %v347, %v346
      %v368 = vpack.c.b16 %v349, %v348
      %v369 = vpack.c.b16 %v351, %v350
      %v370 = vpack.c.b16 %v353, %v352
      %v371 = vpack.c.b16 %v355, %v354
      %v388 = vunpack.c.l.b16 %v240
      %v389 = vunpack.c.l.b16 %v243
      %v390 = vunpack.c.l.b16 %v246
      %v391 = vunpack.c.l.b16 %v249
      %v392 = vunpack.c.l.b16 %v252
      %v393 = vunpack.c.l.b16 %v255
      %v394 = vunpack.c.l.b16 %v258
      %v395 = vunpack.c.l.b16 %v261
      %v396 = vunpack.c.l.b16 %v264
      %v397 = vunpack.c.l.b16 %v267
      %v398 = vunpack.c.l.b16 %v270
      %v399 = vunpack.c.l.b16 %v273
      %v400 = vunpack.c.l.b16 %v276
      %v401 = vunpack.c.l.b16 %v279
      %v402 = vunpack.c.l.b16 %v282
      %v403 = vunpack.c.l.b16 %v285
      %v404 = vpack.c.b16 %v388, %v388
      %v405 = vpack.c.b16 %v389, %v389
      %v406 = vpack.c.b16 %v390, %v390
      %v407 = vpack.c.b16 %v391, %v391
      %v408 = vpack.c.b16 %v392, %v392
      %v409 = vpack.c.b16 %v393, %v393
      %v410 = vpack.c.b16 %v394, %v394
      %v411 = vpack.c.b16 %v395, %v395
      %v412 = vpack.c.b16 %v396, %v396
      %v413 = vpack.c.b16 %v397, %v397
      %v414 = vpack.c.b16 %v398, %v398
      %v415 = vpack.c.b16 %v399, %v399
      %v416 = vpack.c.b16 %v400, %v400
      %v417 = vpack.c.b16 %v401, %v401
      %v418 = vpack.c.b16 %v402, %v402
      %v419 = vpack.c.b16 %v403, %v403
      %vm420 = vsmask.f32 7424
      %v422 = vshrl.u32 %v356, 16
      %v424 = vshll.u32 %v356, 16
      %v426 = vrot.slane %v424, 1
      %v427 = vor.u32 %v422, %v426
      %v429 = vshll.u32 %v404, 16
      %v431 = vrot.slane %v429, 1
      %v432 = vsel %vm420, %v427, %v431
      %v434 = vshrl.u32 %v357, 16
      %v436 = vshll.u32 %v357, 16
      %v438 = vrot.slane %v436, 1
      %v439 = vor.u32 %v434, %v438
      %v441 = vshll.u32 %v405, 16
      %v443 = vrot.slane %v441, 1
      %v444 = vsel %vm420, %v439, %v443
      %v446 = vshrl.u32 %v358, 16
      %v448 = vshll.u32 %v358, 16
      %v450 = vrot.slane %v448, 1
      %v451 = vor.u32 %v446, %v450
      %v453 = vshll.u32 %v406, 16
      %v455 = vrot.slane %v453, 1
      %v456 = vsel %vm420, %v451, %v455
      %v458 = vshrl.u32 %v359, 16
      %v460 = vshll.u32 %v359, 16
      %v462 = vrot.slane %v460, 1
      %v463 = vor.u32 %v458, %v462
      %v465 = vshll.u32 %v407, 16
      %v467 = vrot.slane %v465, 1
      %v468 = vsel %vm420, %v463, %v467
      %v470 = vshrl.u32 %v360, 16
      %v472 = vshll.u32 %v360, 16
      %v474 = vrot.slane %v472, 1
      %v475 = vor.u32 %v470, %v474
      %v477 = vshll.u32 %v408, 16
      %v479 = vrot.slane %v477, 1
      %v480 = vsel %vm420, %v475, %v479
      %v482 = vshrl.u32 %v361, 16
      %v484 = vshll.u32 %v361, 16
      %v486 = vrot.slane %v484, 1
      %v487 = vor.u32 %v482, %v486
      %v489 = vshll.u32 %v409, 16
      %v491 = vrot.slane %v489, 1
      %v492 = vsel %vm420, %v487, %v491
      %v494 = vshrl.u32 %v362, 16
      %v496 = vshll.u32 %v362, 16
      %v498 = vrot.slane %v496, 1
      %v499 = vor.u32 %v494, %v498
      %v501 = vshll.u32 %v410, 16
      %v503 = vrot.slane %v501, 1
      %v504 = vsel %vm420, %v499, %v503
      %v506 = vshrl.u32 %v363, 16
      %v508 = vshll.u32 %v363, 16
      %v510 = vrot.slane %v508, 1
      %v511 = vor.u32 %v506, %v510
      %v513 = vshll.u32 %v411, 16
      %v515 = vrot.slane %v513, 1
      %v516 = vsel %vm420, %v511, %v515
      %v518 = vshrl.u32 %v364, 16
      %v520 = vshll.u32 %v364, 16
      %v522 = vrot.slane %v520, 1
      %v523 = vor.u32 %v518, %v522
      %v525 = vshll.u32 %v412, 16
      %v527 = vrot.slane %v525, 1
      %v528 = vsel %vm420, %v523, %v527
      %v530 = vshrl.u32 %v365, 16
      %v532 = vshll.u32 %v365, 16
      %v534 = vrot.slane %v532, 1
      %v535 = vor.u32 %v530, %v534
      %v537 = vshll.u32 %v413, 16
      %v539 = vrot.slane %v537, 1
      %v540 = vsel %vm420, %v535, %v539
      %v542 = vshrl.u32 %v366, 16
      %v544 = vshll.u32 %v366, 16
      %v546 = vrot.slane %v544, 1
      %v547 = vor.u32 %v542, %v546
      %v549 = vshll.u32 %v414, 16
      %v551 = vrot.slane %v549, 1
      %v552 = vsel %vm420, %v547, %v551
      %v554 = vshrl.u32 %v367, 16
      %v556 = vshll.u32 %v367, 16
      %v558 = vrot.slane %v556, 1
      %v559 = vor.u32 %v554, %v558
      %v561 = vshll.u32 %v415, 16
      %v563 = vrot.slane %v561, 1
      %v564 = vsel %vm420, %v559, %v563
      %v566 = vshrl.u32 %v368, 16
      %v568 = vshll.u32 %v368, 16
      %v570 = vrot.slane %v568, 1
      %v571 = vor.u32 %v566, %v570
      %v573 = vshll.u32 %v416, 16
      %v575 = vrot.slane %v573, 1
      %v576 = vsel %vm420, %v571, %v575
      %v578 = vshrl.u32 %v369, 16
      %v580 = vshll.u32 %v369, 16
      %v582 = vrot.slane %v580, 1
      %v583 = vor.u32 %v578, %v582
      %v585 = vshll.u32 %v417, 16
      %v587 = vrot.slane %v585, 1
      %v588 = vsel %vm420, %v583, %v587
      %v590 = vshrl.u32 %v370, 16
      %v592 = vshll.u32 %v370, 16
      %v594 = vrot.slane %v592, 1
      %v595 = vor.u32 %v590, %v594
      %v597 = vshll.u32 %v418, 16
      %v599 = vrot.slane %v597, 1
      %v600 = vsel %vm420, %v595, %v599
      %v602 = vshrl.u32 %v371, 16
      %v604 = vshll.u32 %v371, 16
      %v606 = vrot.slane %v604, 1
      %v607 = vor.u32 %v602, %v606
      %v609 = vshll.u32 %v419, 16
      %v611 = vrot.slane %v609, 1
      %v612 = vsel %vm420, %v607, %v611
      %613 = vrot.lane.b32.xlu0 %v432, 4
      %v614 = vpop.permute.xlu0 %613
      %615 = vrot.lane.b32.xlu0 %v444, 4
      %v616 = vpop.permute.xlu0 %615
      %617 = vrot.lane.b32.xlu0 %v456, 4
      %v618 = vpop.permute.xlu0 %617
      %619 = vrot.lane.b32.xlu0 %v468, 4
      %v620 = vpop.permute.xlu0 %619
      %621 = vrot.lane.b32.xlu0 %v480, 4
      %v622 = vpop.permute.xlu0 %621
      %623 = vrot.lane.b32.xlu0 %v492, 4
      %v624 = vpop.permute.xlu0 %623
      %625 = vrot.lane.b32.xlu0 %v504, 4
      %v626 = vpop.permute.xlu0 %625
      %627 = vrot.lane.b32.xlu0 %v516, 4
      %v628 = vpop.permute.xlu0 %627
      %629 = vrot.lane.b32.xlu0 %v528, 4
      %v630 = vpop.permute.xlu0 %629
      %631 = vrot.lane.b32.xlu0 %v540, 4
      %v632 = vpop.permute.xlu0 %631
      %633 = vrot.lane.b32.xlu0 %v552, 4
      %v634 = vpop.permute.xlu0 %633
      %635 = vrot.lane.b32.xlu0 %v564, 4
      %v636 = vpop.permute.xlu0 %635
      %637 = vrot.lane.b32.xlu0 %v576, 4
      %v638 = vpop.permute.xlu0 %637
      %639 = vrot.lane.b32.xlu0 %v588, 4
      %v640 = vpop.permute.xlu0 %639
      %641 = vrot.lane.b32.xlu0 %v600, 4
      %v642 = vpop.permute.xlu0 %641
      %643 = vrot.lane.b32.xlu0 %v612, 4
      %v644 = vpop.permute.xlu0 %643
      %vm645 = vcmask 1046528
      %v646 = vrot.slane %v356, 1
      %v647 = vrot.slane %v404, 1
      %v648 = vsel %vm645, %v646, %v647
      %v649 = vrot.slane %v357, 1
      %v650 = vrot.slane %v405, 1
      %v651 = vsel %vm645, %v649, %v650
      %v652 = vrot.slane %v358, 1
      %v653 = vrot.slane %v406, 1
      %v654 = vsel %vm645, %v652, %v653
      %v655 = vrot.slane %v359, 1
      %v656 = vrot.slane %v407, 1
      %v657 = vsel %vm645, %v655, %v656
      %v658 = vrot.slane %v360, 1
      %v659 = vrot.slane %v408, 1
      %v660 = vsel %vm645, %v658, %v659
      %v661 = vrot.slane %v361, 1
      %v662 = vrot.slane %v409, 1
      %v663 = vsel %vm645, %v661, %v662
      %v664 = vrot.slane %v362, 1
      %v665 = vrot.slane %v410, 1
      %v666 = vsel %vm645, %v664, %v665
      %v667 = vrot.slane %v363, 1
      %v668 = vrot.slane %v411, 1
      %v669 = vsel %vm645, %v667, %v668
      %v670 = vrot.slane %v364, 1
      %v671 = vrot.slane %v412, 1
      %v672 = vsel %vm645, %v670, %v671
      %v673 = vrot.slane %v365, 1
      %v674 = vrot.slane %v413, 1
      %v675 = vsel %vm645, %v673, %v674
      %v676 = vrot.slane %v366, 1
      %v677 = vrot.slane %v414, 1
      %v678 = vsel %vm645, %v676, %v677
      %v679 = vrot.slane %v367, 1
      %v680 = vrot.slane %v415, 1
      %v681 = vsel %vm645, %v679, %v680
      %v682 = vrot.slane %v368, 1
      %v683 = vrot.slane %v416, 1
      %v684 = vsel %vm645, %v682, %v683
      %v685 = vrot.slane %v369, 1
      %v686 = vrot.slane %v417, 1
      %v687 = vsel %vm645, %v685, %v686
      %v688 = vrot.slane %v370, 1
      %v689 = vrot.slane %v418, 1
      %v690 = vsel %vm645, %v688, %v689
      %v691 = vrot.slane %v371, 1
      %v692 = vrot.slane %v419, 1
      %v693 = vsel %vm645, %v691, %v692
      %694 = vrot.lane.b32.xlu0 %v648, 8
      %v695 = vpop.permute.xlu0 %694
      %696 = vrot.lane.b32.xlu0 %v651, 8
      %v697 = vpop.permute.xlu0 %696
      %698 = vrot.lane.b32.xlu0 %v654, 8
      %v699 = vpop.permute.xlu0 %698
      %700 = vrot.lane.b32.xlu0 %v657, 8
      %v701 = vpop.permute.xlu0 %700
      %702 = vrot.lane.b32.xlu0 %v660, 8
      %v703 = vpop.permute.xlu0 %702
      %704 = vrot.lane.b32.xlu0 %v663, 8
      %v705 = vpop.permute.xlu0 %704
      %706 = vrot.lane.b32.xlu0 %v666, 8
      %v707 = vpop.permute.xlu0 %706
      %708 = vrot.lane.b32.xlu0 %v669, 8
      %v709 = vpop.permute.xlu0 %708
      %710 = vrot.lane.b32.xlu0 %v672, 8
      %v711 = vpop.permute.xlu0 %710
      %712 = vrot.lane.b32.xlu0 %v675, 8
      %v713 = vpop.permute.xlu0 %712
      %714 = vrot.lane.b32.xlu0 %v678, 8
      %v715 = vpop.permute.xlu0 %714
      %716 = vrot.lane.b32.xlu0 %v681, 8
      %v717 = vpop.permute.xlu0 %716
      %718 = vrot.lane.b32.xlu0 %v684, 8
      %v719 = vpop.permute.xlu0 %718
      %720 = vrot.lane.b32.xlu0 %v687, 8
      %v721 = vpop.permute.xlu0 %720
      %722 = vrot.lane.b32.xlu0 %v690, 8
      %v723 = vpop.permute.xlu0 %722
      %724 = vrot.lane.b32.xlu0 %v693, 8
      %v725 = vpop.permute.xlu0 %724
      %v728 = vunpack.c.l.b16 %v286
      %v729 = vunpack.c.l.b16 %v287
      %v730 = vpack.c.b16 %v729, %v728
      %731 = vrot.lane.b32.xlu0 %v357, 12
      %v732 = vpop.permute.xlu0 %731
      %733 = vrot.lane.b32.xlu0 %v358, 12
      %v734 = vpop.permute.xlu0 %733
      %735 = vrot.lane.b32.xlu0 %v359, 12
      %v736 = vpop.permute.xlu0 %735
      %737 = vrot.lane.b32.xlu0 %v360, 12
      %v738 = vpop.permute.xlu0 %737
      %739 = vrot.lane.b32.xlu0 %v361, 12
      %v740 = vpop.permute.xlu0 %739
      %741 = vrot.lane.b32.xlu0 %v362, 12
      %v742 = vpop.permute.xlu0 %741
      %743 = vrot.lane.b32.xlu0 %v363, 12
      %v744 = vpop.permute.xlu0 %743
      %745 = vrot.lane.b32.xlu0 %v364, 12
      %v746 = vpop.permute.xlu0 %745
      %747 = vrot.lane.b32.xlu0 %v365, 12
      %v748 = vpop.permute.xlu0 %747
      %749 = vrot.lane.b32.xlu0 %v366, 12
      %v750 = vpop.permute.xlu0 %749
      %751 = vrot.lane.b32.xlu0 %v367, 12
      %v752 = vpop.permute.xlu0 %751
      %753 = vrot.lane.b32.xlu0 %v368, 12
      %v754 = vpop.permute.xlu0 %753
      %755 = vrot.lane.b32.xlu0 %v369, 12
      %v756 = vpop.permute.xlu0 %755
      %757 = vrot.lane.b32.xlu0 %v370, 12
      %v758 = vpop.permute.xlu0 %757
      %759 = vrot.lane.b32.xlu0 %v371, 12
      %v760 = vpop.permute.xlu0 %759
      %761 = vrot.lane.b32.xlu0 %v730, 12
      %v762 = vpop.permute.xlu0 %761
      %v764 = vunpack.c.l.b16 %v288
      %v765 = vpack.c.b16 %v764, %v764
      %v767 = vshrl.u32 %v730, 16
      %v769 = vshll.u32 %v730, 16
      %v771 = vrot.slane %v769, 1
      %v772 = vor.u32 %v767, %v771
      %v774 = vshll.u32 %v765, 16
      %v776 = vrot.slane %v774, 1
      %v777 = vsel %vm420, %v772, %v776
      %778 = vrot.lane.b32.xlu0 %v444, 16
      %v779 = vpop.permute.xlu0 %778
      %780 = vrot.lane.b32.xlu0 %v456, 16
      %v781 = vpop.permute.xlu0 %780
      %782 = vrot.lane.b32.xlu0 %v468, 16
      %v783 = vpop.permute.xlu0 %782
      %784 = vrot.lane.b32.xlu0 %v480, 16
      %v785 = vpop.permute.xlu0 %784
      %786 = vrot.lane.b32.xlu0 %v492, 16
      %v787 = vpop.permute.xlu0 %786
      %788 = vrot.lane.b32.xlu0 %v504, 16
      %v789 = vpop.permute.xlu0 %788
      %790 = vrot.lane.b32.xlu0 %v516, 16
      %v791 = vpop.permute.xlu0 %790
      %792 = vrot.lane.b32.xlu0 %v528, 16
      %v793 = vpop.permute.xlu0 %792
      %794 = vrot.lane.b32.xlu0 %v540, 16
      %v795 = vpop.permute.xlu0 %794
      %796 = vrot.lane.b32.xlu0 %v552, 16
      %v797 = vpop.permute.xlu0 %796
      %798 = vrot.lane.b32.xlu0 %v564, 16
      %v799 = vpop.permute.xlu0 %798
      %800 = vrot.lane.b32.xlu0 %v576, 16
      %v801 = vpop.permute.xlu0 %800
      %802 = vrot.lane.b32.xlu0 %v588, 16
      %v803 = vpop.permute.xlu0 %802
      %804 = vrot.lane.b32.xlu0 %v600, 16
      %v805 = vpop.permute.xlu0 %804
      %806 = vrot.lane.b32.xlu0 %v612, 16
      %v807 = vpop.permute.xlu0 %806
      %808 = vrot.lane.b32.xlu0 %v777, 16
      %v809 = vpop.permute.xlu0 %808
      %v810 = vrot.slane %v730, 1
      %v811 = vrot.slane %v765, 1
      %v812 = vsel %vm645, %v810, %v811
      %813 = vrot.lane.b32.xlu0 %v651, 20
      %v814 = vpop.permute.xlu0 %813
      %815 = vrot.lane.b32.xlu0 %v654, 20
      %v816 = vpop.permute.xlu0 %815
      %817 = vrot.lane.b32.xlu0 %v657, 20
      %v818 = vpop.permute.xlu0 %817
      %819 = vrot.lane.b32.xlu0 %v660, 20
      %v820 = vpop.permute.xlu0 %819
      %821 = vrot.lane.b32.xlu0 %v663, 20
      %v822 = vpop.permute.xlu0 %821
      %823 = vrot.lane.b32.xlu0 %v666, 20
      %v824 = vpop.permute.xlu0 %823
      %825 = vrot.lane.b32.xlu0 %v669, 20
      %v826 = vpop.permute.xlu0 %825
      %827 = vrot.lane.b32.xlu0 %v672, 20
      %v828 = vpop.permute.xlu0 %827
      %829 = vrot.lane.b32.xlu0 %v675, 20
      %v830 = vpop.permute.xlu0 %829
      %831 = vrot.lane.b32.xlu0 %v678, 20
      %v832 = vpop.permute.xlu0 %831
      %833 = vrot.lane.b32.xlu0 %v681, 20
      %v834 = vpop.permute.xlu0 %833
      %835 = vrot.lane.b32.xlu0 %v684, 20
      %v836 = vpop.permute.xlu0 %835
      %837 = vrot.lane.b32.xlu0 %v687, 20
      %v838 = vpop.permute.xlu0 %837
      %839 = vrot.lane.b32.xlu0 %v690, 20
      %v840 = vpop.permute.xlu0 %839
      %841 = vrot.lane.b32.xlu0 %v693, 20
      %v842 = vpop.permute.xlu0 %841
      %843 = vrot.lane.b32.xlu0 %v812, 20
      %v844 = vpop.permute.xlu0 %843
      %v847 = vunpack.c.l.b16 %v289
      %v848 = vunpack.c.l.b16 %v290
      %v849 = vpack.c.b16 %v848, %v847
      %850 = vrot.lane.b32.xlu0 %v358, 24
      %v851 = vpop.permute.xlu0 %850
      %852 = vrot.lane.b32.xlu0 %v359, 24
      %v853 = vpop.permute.xlu0 %852
      %854 = vrot.lane.b32.xlu0 %v360, 24
      %v855 = vpop.permute.xlu0 %854
      %856 = vrot.lane.b32.xlu0 %v361, 24
      %v857 = vpop.permute.xlu0 %856
      %858 = vrot.lane.b32.xlu0 %v362, 24
      %v859 = vpop.permute.xlu0 %858
      %860 = vrot.lane.b32.xlu0 %v363, 24
      %v861 = vpop.permute.xlu0 %860
      %862 = vrot.lane.b32.xlu0 %v364, 24
      %v863 = vpop.permute.xlu0 %862
      %864 = vrot.lane.b32.xlu0 %v365, 24
      %v865 = vpop.permute.xlu0 %864
      %866 = vrot.lane.b32.xlu0 %v366, 24
      %v867 = vpop.permute.xlu0 %866
      %868 = vrot.lane.b32.xlu0 %v367, 24
      %v869 = vpop.permute.xlu0 %868
      %870 = vrot.lane.b32.xlu0 %v368, 24
      %v871 = vpop.permute.xlu0 %870
      %872 = vrot.lane.b32.xlu0 %v369, 24
      %v873 = vpop.permute.xlu0 %872
      %874 = vrot.lane.b32.xlu0 %v370, 24
      %v875 = vpop.permute.xlu0 %874
      %876 = vrot.lane.b32.xlu0 %v371, 24
      %v877 = vpop.permute.xlu0 %876
      %878 = vrot.lane.b32.xlu0 %v730, 24
      %v879 = vpop.permute.xlu0 %878
      %880 = vrot.lane.b32.xlu0 %v849, 24
      %v881 = vpop.permute.xlu0 %880
      %v883 = vunpack.c.l.b16 %v291
      %v884 = vpack.c.b16 %v883, %v883
      %v886 = vshrl.u32 %v849, 16
      %v888 = vshll.u32 %v849, 16
      %v890 = vrot.slane %v888, 1
      %v891 = vor.u32 %v886, %v890
      %v893 = vshll.u32 %v884, 16
      %v895 = vrot.slane %v893, 1
      %v896 = vsel %vm420, %v891, %v895
      %897 = vrot.lane.b32.xlu0 %v456, 28
      %v898 = vpop.permute.xlu0 %897
      %899 = vrot.lane.b32.xlu0 %v468, 28
      %v900 = vpop.permute.xlu0 %899
      %901 = vrot.lane.b32.xlu0 %v480, 28
      %v902 = vpop.permute.xlu0 %901
      %903 = vrot.lane.b32.xlu0 %v492, 28
      %v904 = vpop.permute.xlu0 %903
      %905 = vrot.lane.b32.xlu0 %v504, 28
      %v906 = vpop.permute.xlu0 %905
      %907 = vrot.lane.b32.xlu0 %v516, 28
      %v908 = vpop.permute.xlu0 %907
      %909 = vrot.lane.b32.xlu0 %v528, 28
      %v910 = vpop.permute.xlu0 %909
      %911 = vrot.lane.b32.xlu0 %v540, 28
      %v912 = vpop.permute.xlu0 %911
      %913 = vrot.lane.b32.xlu0 %v552, 28
      %v914 = vpop.permute.xlu0 %913
      %915 = vrot.lane.b32.xlu0 %v564, 28
      %v916 = vpop.permute.xlu0 %915
      %917 = vrot.lane.b32.xlu0 %v576, 28
      %v918 = vpop.permute.xlu0 %917
      %919 = vrot.lane.b32.xlu0 %v588, 28
      %v920 = vpop.permute.xlu0 %919
      %921 = vrot.lane.b32.xlu0 %v600, 28
      %v922 = vpop.permute.xlu0 %921
      %923 = vrot.lane.b32.xlu0 %v612, 28
      %v924 = vpop.permute.xlu0 %923
      %925 = vrot.lane.b32.xlu0 %v777, 28
      %v926 = vpop.permute.xlu0 %925
      %927 = vrot.lane.b32.xlu0 %v896, 28
      %v928 = vpop.permute.xlu0 %927
      %v929 = vrot.slane %v849, 1
      %v930 = vrot.slane %v884, 1
      %v931 = vsel %vm645, %v929, %v930
      %932 = vrot.lane.b32.xlu0 %v654, 32
      %v933 = vpop.permute.xlu0 %932
      %934 = vrot.lane.b32.xlu0 %v657, 32
      %v935 = vpop.permute.xlu0 %934
      %936 = vrot.lane.b32.xlu0 %v660, 32
      %v937 = vpop.permute.xlu0 %936
      %938 = vrot.lane.b32.xlu0 %v663, 32
      %v939 = vpop.permute.xlu0 %938
      %940 = vrot.lane.b32.xlu0 %v666, 32
      %v941 = vpop.permute.xlu0 %940
      %942 = vrot.lane.b32.xlu0 %v669, 32
      %v943 = vpop.permute.xlu0 %942
      %944 = vrot.lane.b32.xlu0 %v672, 32
      %v945 = vpop.permute.xlu0 %944
      %946 = vrot.lane.b32.xlu0 %v675, 32
      %v947 = vpop.permute.xlu0 %946
      %948 = vrot.lane.b32.xlu0 %v678, 32
      %v949 = vpop.permute.xlu0 %948
      %950 = vrot.lane.b32.xlu0 %v681, 32
      %v951 = vpop.permute.xlu0 %950
      %952 = vrot.lane.b32.xlu0 %v684, 32
      %v953 = vpop.permute.xlu0 %952
      %954 = vrot.lane.b32.xlu0 %v687, 32
      %v955 = vpop.permute.xlu0 %954
      %956 = vrot.lane.b32.xlu0 %v690, 32
      %v957 = vpop.permute.xlu0 %956
      %958 = vrot.lane.b32.xlu0 %v693, 32
      %v959 = vpop.permute.xlu0 %958
      %960 = vrot.lane.b32.xlu0 %v812, 32
      %v961 = vpop.permute.xlu0 %960
      %962 = vrot.lane.b32.xlu0 %v931, 32
      %v963 = vpop.permute.xlu0 %962
      %vm964 = vcmask 31744
      %v966 = vsel %vm964, %v356, %v614
      %v968 = vsel %vm964, %v357, %v616
      %v970 = vsel %vm964, %v358, %v618
      %v972 = vsel %vm964, %v359, %v620
      %v974 = vsel %vm964, %v360, %v622
      %v976 = vsel %vm964, %v361, %v624
      %v978 = vsel %vm964, %v362, %v626
      %v980 = vsel %vm964, %v363, %v628
      %v982 = vsel %vm964, %v364, %v630
      %v984 = vsel %vm964, %v365, %v632
      %v986 = vsel %vm964, %v366, %v634
      %v988 = vsel %vm964, %v367, %v636
      %v990 = vsel %vm964, %v368, %v638
      %v992 = vsel %vm964, %v369, %v640
      %v994 = vsel %vm964, %v370, %v642
      %v996 = vsel %vm964, %v371, %v644
      %vm997 = vcmask 64512
      %v999 = vsel %vm997, %v966, %v695
      %v1001 = vsel %vm997, %v968, %v697
      %v1003 = vsel %vm997, %v970, %v699
      %v1005 = vsel %vm997, %v972, %v701
      %v1007 = vsel %vm997, %v974, %v703
      %v1009 = vsel %vm997, %v976, %v705
      %v1011 = vsel %vm997, %v978, %v707
      %v1013 = vsel %vm997, %v980, %v709
      %v1015 = vsel %vm997, %v982, %v711
      %v1017 = vsel %vm997, %v984, %v713
      %v1019 = vsel %vm997, %v986, %v715
      %v1021 = vsel %vm997, %v988, %v717
      %v1023 = vsel %vm997, %v990, %v719
      %v1025 = vsel %vm997, %v992, %v721
      %v1027 = vsel %vm997, %v994, %v723
      %v1029 = vsel %vm997, %v996, %v725
      %vm1030 = vcmask 97280
      %v1032 = vsel %vm1030, %v999, %v732
      %v1034 = vsel %vm1030, %v1001, %v734
      %v1036 = vsel %vm1030, %v1003, %v736
      %v1038 = vsel %vm1030, %v1005, %v738
      %v1040 = vsel %vm1030, %v1007, %v740
      %v1042 = vsel %vm1030, %v1009, %v742
      %v1044 = vsel %vm1030, %v1011, %v744
      %v1046 = vsel %vm1030, %v1013, %v746
      %v1048 = vsel %vm1030, %v1015, %v748
      %v1050 = vsel %vm1030, %v1017, %v750
      %v1052 = vsel %vm1030, %v1019, %v752
      %v1054 = vsel %vm1030, %v1021, %v754
      %v1056 = vsel %vm1030, %v1023, %v756
      %v1058 = vsel %vm1030, %v1025, %v758
      %v1060 = vsel %vm1030, %v1027, %v760
      %v1062 = vsel %vm1030, %v1029, %v762
      %vm1063 = vcmask 130048
      %v1065 = vsel %vm1063, %v1032, %v779
      %v1067 = vsel %vm1063, %v1034, %v781
      %v1069 = vsel %vm1063, %v1036, %v783
      %v1071 = vsel %vm1063, %v1038, %v785
      %v1073 = vsel %vm1063, %v1040, %v787
      %v1075 = vsel %vm1063, %v1042, %v789
      %v1077 = vsel %vm1063, %v1044, %v791
      %v1079 = vsel %vm1063, %v1046, %v793
      %v1081 = vsel %vm1063, %v1048, %v795
      %v1083 = vsel %vm1063, %v1050, %v797
      %v1085 = vsel %vm1063, %v1052, %v799
      %v1087 = vsel %vm1063, %v1054, %v801
      %v1089 = vsel %vm1063, %v1056, %v803
      %v1091 = vsel %vm1063, %v1058, %v805
      %v1093 = vsel %vm1063, %v1060, %v807
      %v1095 = vsel %vm1063, %v1062, %v809
      %vm1096 = vcmask 162816
      %v1098 = vsel %vm1096, %v1065, %v814
      %v1100 = vsel %vm1096, %v1067, %v816
      %v1102 = vsel %vm1096, %v1069, %v818
      %v1104 = vsel %vm1096, %v1071, %v820
      %v1106 = vsel %vm1096, %v1073, %v822
      %v1108 = vsel %vm1096, %v1075, %v824
      %v1110 = vsel %vm1096, %v1077, %v826
      %v1112 = vsel %vm1096, %v1079, %v828
      %v1114 = vsel %vm1096, %v1081, %v830
      %v1116 = vsel %vm1096, %v1083, %v832
      %v1118 = vsel %vm1096, %v1085, %v834
      %v1120 = vsel %vm1096, %v1087, %v836
      %v1122 = vsel %vm1096, %v1089, %v838
      %v1124 = vsel %vm1096, %v1091, %v840
      %v1126 = vsel %vm1096, %v1093, %v842
      %v1128 = vsel %vm1096, %v1095, %v844
      %vm1129 = vcmask 195584
      %v1131 = vsel %vm1129, %v1098, %v851
      %v1133 = vsel %vm1129, %v1100, %v853
      %v1135 = vsel %vm1129, %v1102, %v855
      %v1137 = vsel %vm1129, %v1104, %v857
      %v1139 = vsel %vm1129, %v1106, %v859
      %v1141 = vsel %vm1129, %v1108, %v861
      %v1143 = vsel %vm1129, %v1110, %v863
      %v1145 = vsel %vm1129, %v1112, %v865
      %v1147 = vsel %vm1129, %v1114, %v867
      %v1149 = vsel %vm1129, %v1116, %v869
      %v1151 = vsel %vm1129, %v1118, %v871
      %v1153 = vsel %vm1129, %v1120, %v873
      %v1155 = vsel %vm1129, %v1122, %v875
      %v1157 = vsel %vm1129, %v1124, %v877
      %v1159 = vsel %vm1129, %v1126, %v879
      %v1161 = vsel %vm1129, %v1128, %v881
      %vm1162 = vcmask 228352
      %v1164 = vsel %vm1162, %v1131, %v898
      %v1166 = vsel %vm1162, %v1133, %v900
      %v1168 = vsel %vm1162, %v1135, %v902
      %v1170 = vsel %vm1162, %v1137, %v904
      %v1172 = vsel %vm1162, %v1139, %v906
      %v1174 = vsel %vm1162, %v1141, %v908
      %v1176 = vsel %vm1162, %v1143, %v910
      %v1178 = vsel %vm1162, %v1145, %v912
      %v1180 = vsel %vm1162, %v1147, %v914
      %v1182 = vsel %vm1162, %v1149, %v916
      %v1184 = vsel %vm1162, %v1151, %v918
      %v1186 = vsel %vm1162, %v1153, %v920
      %v1188 = vsel %vm1162, %v1155, %v922
      %v1190 = vsel %vm1162, %v1157, %v924
      %v1192 = vsel %vm1162, %v1159, %v926
      %v1194 = vsel %vm1162, %v1161, %v928
      %vm1195 = vcmask 261120
      %v1197 = vsel %vm1195, %v1164, %v933
      %v1199 = vsel %vm1195, %v1166, %v935
      %v1201 = vsel %vm1195, %v1168, %v937
      %v1203 = vsel %vm1195, %v1170, %v939
      %v1205 = vsel %vm1195, %v1172, %v941
      %v1207 = vsel %vm1195, %v1174, %v943
      %v1209 = vsel %vm1195, %v1176, %v945
      %v1211 = vsel %vm1195, %v1178, %v947
      %v1213 = vsel %vm1195, %v1180, %v949
      %v1215 = vsel %vm1195, %v1182, %v951
      %v1217 = vsel %vm1195, %v1184, %v953
      %v1219 = vsel %vm1195, %v1186, %v955
      %v1221 = vsel %vm1195, %v1188, %v957
      %v1223 = vsel %vm1195, %v1190, %v959
      %v1225 = vsel %vm1195, %v1192, %v961
      %v1227 = vsel %vm1195, %v1194, %v963
      %v1228 = vld [vmem:[%s1] sm:$0xf]
      %v1229 = vld [vmem:[%s1 + $0x4] sm:$0xf]
      %v1230 = vld [vmem:[%s1 + $0x8] sm:$0xf]
      %v1231 = vld [vmem:[%s1 + $0xc] sm:$0xf]
      %v1232 = vld [vmem:[%s1 + $0x10] sm:$0x3]
      %v1238 = vunpack.c.l.b16 %v1228
      %v1239 = vunpack.c.l.b16 %v1229
      %v1240 = vunpack.c.l.b16 %v1230
      %v1241 = vunpack.c.l.b16 %v1231
      %v1242 = vunpack.c.l.b16 %v1232
      %v1243 = vpack.c.b16 %v1239, %v1238
      %v1244 = vpack.c.b16 %v1241, %v1240
      %v1245 = vpack.c.b16 %v1242, %v1242
      %vm1248 = vcmask 293888
      %v1249 = vsel %vm1248, %v1197, 0
      %v1251 = vsel %vm1248, %v1199, 0
      %v1253 = vsel %vm1248, %v1201, 0
      %v1255 = vsel %vm1248, %v1203, 0
      %v1257 = vsel %vm1248, %v1205, 0
      %v1259 = vsel %vm1248, %v1207, 0
      %v1261 = vsel %vm1248, %v1209, 0
      %v1263 = vsel %vm1248, %v1211, 0
      %v1265 = vsel %vm1248, %v1213, 0
      %v1267 = vsel %vm1248, %v1215, 0
      %v1269 = vsel %vm1248, %v1217, 0
      %v1271 = vsel %vm1248, %v1219, 0
      %v1273 = vsel %vm1248, %v1221, 0
      %v1275 = vsel %vm1248, %v1223, 0
      %v1277 = vsel %vm1248, %v1225, 0
      %v1279 = vsel %vm1248, %v1227, 0
      %vm1281 = vcmask 1041408
      %v1283 = vsel %vm1281, %v1245, 0
      %1285 = vmatprep.subr.bf16.mxu0 0
      %1286 = vmatpush1.bf16.msra.mxu0 %v1243
      %1287 = vmatprep.subr.bf16.mxu0 0
      %1288 = vmatpush1.bf16.msra.mxu0 %v1244
      %1289 = vmatprep.subr.bf16.mxu0 0
      %1290 = vmatpush1.bf16.msra.mxu0 %v1283
      %1291 = vmatprep.subr.bf16.mxu0 0
      %1292 = vmatpush1.bf16.msra.mxu0 0
      %1293 = vmatprep.subr.bf16.mxu0 0
      %1294 = vmatpush1.bf16.msra.mxu0 0
      %1295 = vmatprep.subr.bf16.mxu0 0
      %1296 = vmatpush1.bf16.msra.mxu0 0
      %1297 = vmatprep.subr.bf16.mxu0 0
      %1298 = vmatpush1.bf16.msra.mxu0 0
      %1299 = vmatprep.subr.bf16.mxu0 0
      %1300 = vmatpush1.bf16.msra.mxu0 0
      %1301 = vmatprep.subr.bf16.mxu0 0
      %1302 = vmatpush1.bf16.msra.mxu0 0
      %1303 = vmatprep.subr.bf16.mxu0 0
      %1304 = vmatpush1.bf16.msra.mxu0 0
      %1305 = vmatprep.subr.bf16.mxu0 0
      %1306 = vmatpush1.bf16.msra.mxu0 0
      %1307 = vmatprep.subr.bf16.mxu0 0
      %1308 = vmatpush1.bf16.msra.mxu0 0
      %1309 = vmatprep.subr.bf16.mxu0 0
      %1310 = vmatpush1.bf16.msra.mxu0 0
      %1311 = vmatprep.subr.bf16.mxu0 0
      %1312 = vmatpush1.bf16.msra.mxu0 0
      %1313 = vmatprep.subr.bf16.mxu0 0
      %1314 = vmatpush1.bf16.msra.mxu0 0
      %1315 = vmatprep.subr.bf16.mxu0 0
      %1316 = vmatpush1.bf16.msra.mxu0 0
      %1317 = vmatprep.mubr.bf16.mxu0 0
      %1318 = vmatmul.mubr.bf16.gmra.mrb[0].mxu0 %v1249
      %v1319 = vpop.f32.mrb[0].mxu0
      %v1320 = vadd.f32 0.0, %v1319
      %v1321 = vpop.f32.mrb[0].mxu0
      %v1322 = vpop.f32.mrb[0].mxu0
      %v1323 = vadd.f32 0.0, %v1322
      %v1324 = vpop.f32.mrb[0].mxu0
      %1325 = vmatprep.mubr.bf16.mxu0 0
      %1326 = vmatmul.mubr.bf16.gmra.mrb[0].mxu0 %v1251
      %v1327 = vpop.f32.mrb[0].mxu0
      %v1328 = vadd.f32 0.0, %v1327
      %v1329 = vpop.f32.mrb[0].mxu0
      %v1330 = vpop.f32.mrb[0].mxu0
      %v1331 = vadd.f32 0.0, %v1330
      %v1332 = vpop.f32.mrb[0].mxu0
      %1333 = vmatprep.mubr.bf16.mxu0 0
      %1334 = vmatmul.mubr.bf16.gmra.mrb[0].mxu0 %v1253
      %v1335 = vpop.f32.mrb[0].mxu0
      %v1336 = vadd.f32 0.0, %v1335
      %v1337 = vpop.f32.mrb[0].mxu0
      %v1338 = vpop.f32.mrb[0].mxu0
      %v1339 = vadd.f32 0.0, %v1338
      %v1340 = vpop.f32.mrb[0].mxu0
      %1341 = vmatprep.mubr.bf16.mxu0 0
      %1342 = vmatmul.mubr.bf16.gmra.mrb[0].mxu0 %v1255
      %v1343 = vpop.f32.mrb[0].mxu0
      %v1344 = vadd.f32 0.0, %v1343
      %v1345 = vpop.f32.mrb[0].mxu0
      %v1346 = vpop.f32.mrb[0].mxu0
      %v1347 = vadd.f32 0.0, %v1346
      %v1348 = vpop.f32.mrb[0].mxu0
      %1349 = vmatprep.mubr.bf16.mxu0 0
      %1350 = vmatmul.mubr.bf16.gmra.mrb[0].mxu0 %v1257
      %v1351 = vpop.f32.mrb[0].mxu0
      %v1352 = vadd.f32 0.0, %v1351
      %v1353 = vpop.f32.mrb[0].mxu0
      %v1354 = vpop.f32.mrb[0].mxu0
      %v1355 = vadd.f32 0.0, %v1354
      %v1356 = vpop.f32.mrb[0].mxu0
      %1357 = vmatprep.mubr.bf16.mxu0 0
      %1358 = vmatmul.mubr.bf16.gmra.mrb[0].mxu0 %v1259
      %v1359 = vpop.f32.mrb[0].mxu0
      %v1360 = vadd.f32 0.0, %v1359
      %v1361 = vpop.f32.mrb[0].mxu0
      %v1362 = vpop.f32.mrb[0].mxu0
      %v1363 = vadd.f32 0.0, %v1362
      %v1364 = vpop.f32.mrb[0].mxu0
      %1365 = vmatprep.mubr.bf16.mxu0 0
      %1366 = vmatmul.mubr.bf16.gmra.mrb[0].mxu0 %v1261
      %v1367 = vpop.f32.mrb[0].mxu0
      %v1368 = vadd.f32 0.0, %v1367
      %v1369 = vpop.f32.mrb[0].mxu0
      %v1370 = vpop.f32.mrb[0].mxu0
      %v1371 = vadd.f32 0.0, %v1370
      %v1372 = vpop.f32.mrb[0].mxu0
      %1373 = vmatprep.mubr.bf16.mxu0 0
      %1374 = vmatmul.mubr.bf16.gmra.mrb[0].mxu0 %v1263
      %v1375 = vpop.f32.mrb[0].mxu0
      %v1376 = vadd.f32 0.0, %v1375
      %v1377 = vpop.f32.mrb[0].mxu0
      %v1378 = vpop.f32.mrb[0].mxu0
      %v1379 = vadd.f32 0.0, %v1378
      %v1380 = vpop.f32.mrb[0].mxu0
      %1381 = vmatprep.mubr.bf16.mxu0 0
      %1382 = vmatmul.mubr.bf16.gmra.mrb[0].mxu0 %v1265
      %v1383 = vpop.f32.mrb[0].mxu0
      %v1384 = vadd.f32 0.0, %v1383
      %v1385 = vpop.f32.mrb[0].mxu0
      %v1386 = vpop.f32.mrb[0].mxu0
      %v1387 = vadd.f32 0.0, %v1386
      %v1388 = vpop.f32.mrb[0].mxu0
      %1389 = vmatprep.mubr.bf16.mxu0 0
      %1390 = vmatmul.mubr.bf16.gmra.mrb[0].mxu0 %v1267
      %v1391 = vpop.f32.mrb[0].mxu0
      %v1392 = vadd.f32 0.0, %v1391
      %v1393 = vpop.f32.mrb[0].mxu0
      %v1394 = vpop.f32.mrb[0].mxu0
      %v1395 = vadd.f32 0.0, %v1394
      %v1396 = vpop.f32.mrb[0].mxu0
      %1397 = vmatprep.mubr.bf16.mxu0 0
      %1398 = vmatmul.mubr.bf16.gmra.mrb[0].mxu0 %v1269
      %v1399 = vpop.f32.mrb[0].mxu0
      %v1400 = vadd.f32 0.0, %v1399
      %v1401 = vpop.f32.mrb[0].mxu0
      %v1402 = vpop.f32.mrb[0].mxu0
      %v1403 = vadd.f32 0.0, %v1402
      %v1404 = vpop.f32.mrb[0].mxu0
      %1405 = vmatprep.mubr.bf16.mxu0 0
      %1406 = vmatmul.mubr.bf16.gmra.mrb[0].mxu0 %v1271
      %v1407 = vpop.f32.mrb[0].mxu0
      %v1408 = vadd.f32 0.0, %v1407
      %v1409 = vpop.f32.mrb[0].mxu0
      %v1410 = vpop.f32.mrb[0].mxu0
      %v1411 = vadd.f32 0.0, %v1410
      %v1412 = vpop.f32.mrb[0].mxu0
      %1413 = vmatprep.mubr.bf16.mxu0 0
      %1414 = vmatmul.mubr.bf16.gmra.mrb[0].mxu0 %v1273
      %v1415 = vpop.f32.mrb[0].mxu0
      %v1416 = vadd.f32 0.0, %v1415
      %v1417 = vpop.f32.mrb[0].mxu0
      %v1418 = vpop.f32.mrb[0].mxu0
      %v1419 = vadd.f32 0.0, %v1418
      %v1420 = vpop.f32.mrb[0].mxu0
      %1421 = vmatprep.mubr.bf16.mxu0 0
      %1422 = vmatmul.mubr.bf16.gmra.mrb[0].mxu0 %v1275
      %v1423 = vpop.f32.mrb[0].mxu0
      %v1424 = vadd.f32 0.0, %v1423
      %v1425 = vpop.f32.mrb[0].mxu0
      %v1426 = vpop.f32.mrb[0].mxu0
      %v1427 = vadd.f32 0.0, %v1426
      %v1428 = vpop.f32.mrb[0].mxu0
      %1429 = vmatprep.mubr.bf16.mxu0 0
      %1430 = vmatmul.mubr.bf16.gmra.mrb[0].mxu0 %v1277
      %v1431 = vpop.f32.mrb[0].mxu0
      %v1432 = vadd.f32 0.0, %v1431
      %v1433 = vpop.f32.mrb[0].mxu0
      %v1434 = vpop.f32.mrb[0].mxu0
      %v1435 = vadd.f32 0.0, %v1434
      %v1436 = vpop.f32.mrb[0].mxu0
      %1437 = vmatprep.mubr.bf16.mxu0 0
      %1438 = vmatmul.mubr.bf16.gmra.mrb[0].mxu0 %v1279
      %v1439 = vpop.f32.mrb[0].mxu0
      %v1440 = vadd.f32 0.0, %v1439
      %v1441 = vpop.f32.mrb[0].mxu0
      %v1442 = vpop.f32.mrb[0].mxu0
      %v1443 = vadd.f32 0.0, %v1442
      %v1444 = vpop.f32.mrb[0].mxu0
      %1445 = vdwg.mxu0
      %v1446 = vld [vmem:[%s2] sm:$0x1]
      %v1448 = vlaneseq
      %v1449 = vshrl.u32 %v1448, 7
      %v1450 = vsub.s32 0, %v1449
      %v1451 = vrot.slane %v1446, %v1450
      %v1453 = vmul.f32 %v1320, %v1451
      %v1454 = vmul.f32 %v1323, %v1451
      %v1455 = vmul.f32 %v1328, %v1451
      %v1456 = vmul.f32 %v1331, %v1451
      %v1457 = vmul.f32 %v1336, %v1451
      %v1458 = vmul.f32 %v1339, %v1451
      %v1459 = vmul.f32 %v1344, %v1451
      %v1460 = vmul.f32 %v1347, %v1451
      %v1461 = vmul.f32 %v1352, %v1451
      %v1462 = vmul.f32 %v1355, %v1451
      %v1463 = vmul.f32 %v1360, %v1451
      %v1464 = vmul.f32 %v1363, %v1451
      %v1465 = vmul.f32 %v1368, %v1451
      %v1466 = vmul.f32 %v1371, %v1451
      %v1467 = vmul.f32 %v1376, %v1451
      %v1468 = vmul.f32 %v1379, %v1451
      %v1469 = vmul.f32 %v1384, %v1451
      %v1470 = vmul.f32 %v1387, %v1451
      %v1471 = vmul.f32 %v1392, %v1451
      %v1472 = vmul.f32 %v1395, %v1451
      %v1473 = vmul.f32 %v1400, %v1451
      %v1474 = vmul.f32 %v1403, %v1451
      %v1475 = vmul.f32 %v1408, %v1451
      %v1476 = vmul.f32 %v1411, %v1451
      %v1477 = vmul.f32 %v1416, %v1451
      %v1478 = vmul.f32 %v1419, %v1451
      %v1479 = vmul.f32 %v1424, %v1451
      %v1480 = vmul.f32 %v1427, %v1451
      %v1481 = vmul.f32 %v1432, %v1451
      %v1482 = vmul.f32 %v1435, %v1451
      %v1483 = vmul.f32 %v1440, %v1451
      %v1484 = vmul.f32 %v1443, %v1451
      %v1485 = vld [vmem:[%s3] sm:$0x1]
      %v1487 = vlaneseq
      %v1488 = vshrl.u32 %v1487, 7
      %v1489 = vsub.s32 0, %v1488
      %v1490 = vrot.slane %v1485, %v1489
      %v1492 = vadd.f32 %v1453, %v1490
      %v1493 = vadd.f32 %v1454, %v1490
      %v1494 = vadd.f32 %v1455, %v1490
      %v1495 = vadd.f32 %v1456, %v1490
      %v1496 = vadd.f32 %v1457, %v1490
      %v1497 = vadd.f32 %v1458, %v1490
      %v1498 = vadd.f32 %v1459, %v1490
      %v1499 = vadd.f32 %v1460, %v1490
      %v1500 = vadd.f32 %v1461, %v1490
      %v1501 = vadd.f32 %v1462, %v1490
      %v1502 = vadd.f32 %v1463, %v1490
      %v1503 = vadd.f32 %v1464, %v1490
      %v1504 = vadd.f32 %v1465, %v1490
      %v1505 = vadd.f32 %v1466, %v1490
      %v1506 = vadd.f32 %v1467, %v1490
      %v1507 = vadd.f32 %v1468, %v1490
      %v1508 = vadd.f32 %v1469, %v1490
      %v1509 = vadd.f32 %v1470, %v1490
      %v1510 = vadd.f32 %v1471, %v1490
      %v1511 = vadd.f32 %v1472, %v1490
      %v1512 = vadd.f32 %v1473, %v1490
      %v1513 = vadd.f32 %v1474, %v1490
      %v1514 = vadd.f32 %v1475, %v1490
      %v1515 = vadd.f32 %v1476, %v1490
      %v1516 = vadd.f32 %v1477, %v1490
      %v1517 = vadd.f32 %v1478, %v1490
      %v1518 = vadd.f32 %v1479, %v1490
      %v1519 = vadd.f32 %v1480, %v1490
      %v1520 = vadd.f32 %v1481, %v1490
      %v1521 = vadd.f32 %v1482, %v1490
      %v1522 = vadd.f32 %v1483, %v1490
      %v1523 = vadd.f32 %v1484, %v1490
      %v1524 = vmax.f32 %v1492, 0.0
      %v1525 = vmax.f32 %v1493, 0.0
      %v1526 = vmax.f32 %v1494, 0.0
      %v1527 = vmax.f32 %v1495, 0.0
      %v1528 = vmax.f32 %v1496, 0.0
      %v1529 = vmax.f32 %v1497, 0.0
      %v1530 = vmax.f32 %v1498, 0.0
      %v1531 = vmax.f32 %v1499, 0.0
      %v1532 = vmax.f32 %v1500, 0.0
      %v1533 = vmax.f32 %v1501, 0.0
      %v1534 = vmax.f32 %v1502, 0.0
      %v1535 = vmax.f32 %v1503, 0.0
      %v1536 = vmax.f32 %v1504, 0.0
      %v1537 = vmax.f32 %v1505, 0.0
      %v1538 = vmax.f32 %v1506, 0.0
      %v1539 = vmax.f32 %v1507, 0.0
      %v1540 = vmax.f32 %v1508, 0.0
      %v1541 = vmax.f32 %v1509, 0.0
      %v1542 = vmax.f32 %v1510, 0.0
      %v1543 = vmax.f32 %v1511, 0.0
      %v1544 = vmax.f32 %v1512, 0.0
      %v1545 = vmax.f32 %v1513, 0.0
      %v1546 = vmax.f32 %v1514, 0.0
      %v1547 = vmax.f32 %v1515, 0.0
      %v1548 = vmax.f32 %v1516, 0.0
      %v1549 = vmax.f32 %v1517, 0.0
      %v1550 = vmax.f32 %v1518, 0.0
      %v1551 = vmax.f32 %v1519, 0.0
      %v1552 = vmax.f32 %v1520, 0.0
      %v1553 = vmax.f32 %v1521, 0.0
      %v1554 = vmax.f32 %v1522, 0.0
      %v1555 = vmax.f32 %v1523, 0.0
      %1556 = vst [vmem:[%s235] sm:$0xff] %v1524
      %1557 = vst [vmem:[%s235 + $0x8] sm:$0xff] %v1525
      %1558 = vst [vmem:[%s235 + $0x10] sm:$0xff] %v1526
      %1559 = vst [vmem:[%s235 + $0x18] sm:$0xff] %v1527
      %1560 = vst [vmem:[%s235 + $0x20] sm:$0xff] %v1528
      %1561 = vst [vmem:[%s235 + $0x28] sm:$0xff] %v1529
      %1562 = vst [vmem:[%s235 + $0x30] sm:$0xff] %v1530
      %1563 = vst [vmem:[%s235 + $0x38] sm:$0xff] %v1531
      %1564 = vst [vmem:[%s235 + $0x40] sm:$0xff] %v1532
      %1565 = vst [vmem:[%s235 + $0x48] sm:$0xff] %v1533
      %1566 = vst [vmem:[%s235 + $0x50] sm:$0xff] %v1534
      %1567 = vst [vmem:[%s235 + $0x58] sm:$0xff] %v1535
      %1568 = vst [vmem:[%s235 + $0x60] sm:$0xff] %v1536
      %1569 = vst [vmem:[%s235 + $0x68] sm:$0xff] %v1537
      %1570 = vst [vmem:[%s235 + $0x70] sm:$0xff] %v1538
      %1571 = vst [vmem:[%s235 + $0x78] sm:$0xff] %v1539
      %1572 = vst [vmem:[%s235 + $0x80] sm:$0xff] %v1540
      %1573 = vst [vmem:[%s235 + $0x88] sm:$0xff] %v1541
      %1574 = vst [vmem:[%s235 + $0x90] sm:$0xff] %v1542
      %1575 = vst [vmem:[%s235 + $0x98] sm:$0xff] %v1543
      %1576 = vst [vmem:[%s235 + $0xa0] sm:$0xff] %v1544
      %1577 = vst [vmem:[%s235 + $0xa8] sm:$0xff] %v1545
      %1578 = vst [vmem:[%s235 + $0xb0] sm:$0xff] %v1546
      %1579 = vst [vmem:[%s235 + $0xb8] sm:$0xff] %v1547
      %1580 = vst [vmem:[%s235 + $0xc0] sm:$0xff] %v1548
      %1581 = vst [vmem:[%s235 + $0xc8] sm:$0xff] %v1549
      %1582 = vst [vmem:[%s235 + $0xd0] sm:$0xff] %v1550
      %1583 = vst [vmem:[%s235 + $0xd8] sm:$0xff] %v1551
      %1584 = vst [vmem:[%s235 + $0xe0] sm:$0xff] %v1552
      %1585 = vst [vmem:[%s235 + $0xe8] sm:$0xff] %v1553
      %1586 = vst [vmem:[%s235 + $0xf0] sm:$0xff] %v1554
      %1587 = vst [vmem:[%s235 + $0xf8] sm:$0xff] %v1555
      %s1588 = smul.u32 16, %s20
      %p1589 = scmp.lt.s32.totalorder %s19, 1
      %s1590 = scalar_select %p1589, %s19, 1
      %p1591 = scmp.lt.s32.totalorder %s1588, 15
      %s1592 = scalar_select %p1591, %s1588, 15
      %s1593 = smul.addr %s1592, 2
      %s1594 = smul.addr %s1590, 32
      %s1595 = sadd.s32 %s1593, %s1594
      %s1596 = smul.addr %s1595, 8
      %s1597 = scalar_lea.vmem %s4, %s1596
      // Predicated region
      $region37: #{conv_bn.3} parent=35 // pred_check
        %p1598 = pneg %p138
      $region38: #{conv_bn.3} parent=35 // pred_check_branch
        %1600 = sbr.rel (%p1598) target = $region40
      $region39: #{conv_bn.3} parent=35 // pred_region
        %s1601 = smul.u32 16, %s20
      $region40: #{conv_bn.3} parent=35 // pred_fallthru
        _
    $region36: #{conv_bn.3} parent=5 // pred_fallthru
      _
    %p1602 = scmp.le.s32.totalorder 2, %s10
    // Predicated region
    $region41: #{conv_bn.3} parent=5 // pred_check
      %p1603 = pneg %p1602
    $region42: #{conv_bn.3} parent=5 // pred_check_branch
      %1605 = sbr.rel (%p1603) target = $region44
    $region43: #{conv_bn.3} parent=5 // pred_region
      %s1606 = ssub.s32 %s10, 2
      // Predicated region
      $region45: #{conv_bn.3} parent=43 // pred_check
        %p1607 = pneg %p144
      $region46: #{conv_bn.3} parent=43 // pred_check_branch
        %1609 = sbr.rel (%p1607) target = $region48
      $region47: #{conv_bn.3} parent=43 // pred_region
        %s1610 = smul.u32 16, %s22
        %p1611 = scmp.lt.s32.totalorder %s21, 1
        %s1612 = scalar_select %p1611, %s21, 1
        %p1613 = scmp.lt.s32.totalorder %s1610, 15
        %s1614 = scalar_select %p1613, %s1610, 15
        %s1615 = smul.addr %s1614, 2
        %s1616 = smul.addr %s1612, 32
        %s1617 = sadd.s32 %s1615, %s1616
        %s1618 = smul.addr %s1617, 8
        %s1619 = scalar_lea.vmem %s4, %s1618
      $region48: #{conv_bn.3} parent=43 // pred_fallthru
        _
    $region44: #{conv_bn.3} parent=5 // pred_fallthru
      _
  $region6: #{conv_bn.3} parent=0 // loop_footer
    %s14 = sadd.s32 1, %s10
  $region7: #{conv_bn.3} parent=0 // loop_footer_branch
    %9 = sbr.rel target = $region3
  $region8: #{conv_bn.3} parent=0 // loop_exit
    _

</llo_original>
